<compile_context>
chip_gen: v7x
topology: tpu7x:2x2x1
jax: 0.10.0
libtpu: 0.0.40
codegen_flags: <defaults>
</compile_context>

<pallas_src>
import jax
import jax.numpy as jnp
from jax.experimental import pallas as pl
from jax.experimental.pallas import tpu as pltpu

HIDDEN = 256          # nn.Linear(in_feat, 256) hidden width (fixed by the module)
_H_CHUNK = 128        # hidden-dim rows kept live at a time
_VPU_MM1_MAX_C = 8    # at/below this in_feat, matmul1 runs as a VPU outer product


def lin2d_kernel(x_ref, w1_ref, b1_ref, w2_ref, b2_ref, o_ref):
    """One (image, spatial-tile) grid step.

    x_ref : (C, T)            lane-dense spatial slab of one image (NCHW layout)
    w1_ref: (hidden, C)       nn.Linear(in_feat, 256).weight
    b1_ref: (hidden, 1)       float32
    w2_ref: (out_feat, hidden) nn.Linear(256, out_feat).weight
    b2_ref: (out_feat, 1)     float32
    o_ref : (out_feat, T)
    """
    C = x_ref.shape[0]
    hidden = w1_ref.shape[0]
    chunk = min(_H_CHUNK, hidden)
    mm1_on_vpu = C <= _VPU_MM1_MAX_C

    x = x_ref[...]
    if mm1_on_vpu:
        # Degenerate-K matmul: run it on the VPU in f32 (frees the MXU, which
        # would pad C up to a full contraction pass anyway).
        x = x.astype(jnp.float32)

    y = None
    for k0 in range(0, hidden, chunk):           # 128-row hidden chunks
        w1_k = w1_ref[k0:k0 + chunk, :]
        b1_k = b1_ref[k0:k0 + chunk, :]
        if mm1_on_vpu:
            # h = b1 + sum_c w1[:, c] (outer) x[c, :]  (bias folded into init)
            h = b1_k + w1_k[:, 0:1].astype(jnp.float32) * x[0:1, :]
            for c in range(1, C):
                h = h + w1_k[:, c:c + 1].astype(jnp.float32) * x[c:c + 1, :]
        else:
            h = jnp.dot(w1_k, x, preferred_element_type=jnp.float32) + b1_k
        h = jnp.maximum(h, 0.0)                  # ReLU
        part = jnp.dot(w2_ref[:, k0:k0 + chunk], h.astype(w2_ref.dtype),
                       preferred_element_type=jnp.float32)
        y = part if y is None else y + part

    o_ref[...] = (y + b2_ref[...]).astype(o_ref.dtype)


def _round_up(v, m):
    return -(-v // m) * m


def _pick_tile(hw, n, tile_hw):
    """Lane tile: a multiple of 128 (or the full extent), <= requested size."""
    tile = max(128, (int(tile_hw) // 128) * 128)     # 128-align the request
    if tile >= hw:
        if n == 1 and hw > 128:
            # Guarantee >= 2 parallel grid steps so a v7x 2-TC chip splits work.
            tile = _round_up(_round_up(hw, 2) // 2, 128)
        else:
            tile = hw            # full extent: always a legal block last-dim
    return tile


def lin2d_pallas(x_nchw, w1, b1, w2, b2, *, tile_hw=2048,
                 compute_dtype=jnp.bfloat16):
    """Lin2D forward.

    x_nchw: (N, C, H, W) with C == in_feat.
    w1: (256, in_feat),  b1: (256,)        [nn.Linear(in_feat, 256) layout]
    w2: (out_feat, 256), b2: (out_feat,)   [nn.Linear(256, out_feat) layout]
    compute_dtype: MXU operand dtype (bf16 ~3x faster; float32 = bit-faithful).
    Returns (N, out_feat, H, W) in x_nchw.dtype.
    """
    N, C, H, W = x_nchw.shape
    hidden, c_in = w1.shape
    out_feat = w2.shape[0]
    assert c_in == C and w2.shape == (out_feat, hidden)
    HW = H * W

    # NCHW -> (N, C, H*W): contiguous view, no data movement / no transpose.
    x = x_nchw.reshape(N, C, HW)

    tile = _pick_tile(HW, N, tile_hw)
    n_hw = pl.cdiv(HW, tile)

    mm1_on_vpu = C <= _VPU_MM1_MAX_C
    if mm1_on_vpu:
        w1c = w1.astype(jnp.float32)      # used on the VPU in f32 (tiny array)
    else:
        # matmul1 goes to the MXU: bf16 operands, f32 accumulation.
        x = x.astype(compute_dtype)
        w1c = w1.astype(compute_dtype)
    w2c = w2.astype(compute_dtype)
    b1c = b1.astype(jnp.float32).reshape(hidden, 1)
    b2c = b2.astype(jnp.float32).reshape(out_feat, 1)

    out = pl.pallas_call(
        lin2d_kernel,
        out_shape=jax.ShapeDtypeStruct((N, out_feat, HW), x_nchw.dtype),
        grid_spec=pltpu.PrefetchScalarGridSpec(
            num_scalar_prefetch=0,
            grid=(N, n_hw),
            in_specs=[
                # x: one image (squeezed), all channels, one spatial tile.
                pl.BlockSpec((None, C, tile), lambda n, j: (n, 0, j)),
                # Weights / biases: full, grid-invariant (stay VMEM-resident).
                pl.BlockSpec((hidden, C), lambda n, j: (0, 0)),
                pl.BlockSpec((hidden, 1), lambda n, j: (0, 0)),
                pl.BlockSpec((out_feat, hidden), lambda n, j: (0, 0)),
                pl.BlockSpec((out_feat, 1), lambda n, j: (0, 0)),
            ],
            out_specs=pl.BlockSpec((None, out_feat, tile),
                                   lambda n, j: (n, 0, j)),
        ),
        compiler_params=pltpu.CompilerParams(
            dimension_semantics=("parallel", "parallel"),
            vmem_limit_bytes=32 * 1024 * 1024,
        ),
    )(x, w1c, b1c, w2c, b2c)

    # Already NCHW: just restore the spatial dims (free view).
    return out.reshape(N, out_feat, H, W)


def lin2d_reference(x_nchw, w1, b1, w2, b2):
    x = jnp.transpose(x_nchw, (0, 2, 3, 1))              # NHWC
    h = jnp.maximum(x @ w1.T + b1, 0.0)
    y = h @ w2.T + b2
    return jnp.transpose(y, (0, 3, 1, 2))                # NCHW


def _make_params(key, in_feat, out_feat):
    kw1, kb1, kw2, kb2 = jax.random.split(key, 4)
    s1 = 1.0 / jnp.sqrt(jnp.float32(in_feat))
    s2 = 1.0 / jnp.sqrt(jnp.float32(HIDDEN))
    w1 = jax.random.uniform(kw1, (HIDDEN, in_feat), jnp.float32, -s1, s1)
    b1 = jax.random.uniform(kb1, (HIDDEN,), jnp.float32, -s1, s1)
    w2 = jax.random.uniform(kw2, (out_feat, HIDDEN), jnp.float32, -s2, s2)
    b2 = jax.random.uniform(kb2, (out_feat,), jnp.float32, -s2, s2)
    return w1, b1, w2, b2


if __name__ == "__main__":
    key = jax.random.PRNGKey(0)
    k0, k1, k2, k3 = jax.random.split(key, 4)

    # Case 1: module-consistent small shapes, default bf16 compute path.
    N, in_feat, H, W, out_feat = 2, 4, 16, 16, 8
    x = jax.random.normal(k0, (N, in_feat, H, W), dtype=jnp.float32)
    w1, b1, w2, b2 = _make_params(k1, in_feat, out_feat)
    ref = lin2d_reference(x, w1, b1, w2, b2)

    out_bf16 = jax.block_until_ready(lin2d_pallas(x, w1, b1, w2, b2))
    assert out_bf16.shape == (N, out_feat, H, W)
    assert jnp.allclose(out_bf16, ref, atol=5e-2, rtol=5e-2)

    # Case 2: same shapes, full-f32 compute path (tight-tolerance check).
    out_f32 = jax.block_until_ready(
        lin2d_pallas(x, w1, b1, w2, b2, compute_dtype=jnp.float32))
    assert jnp.allclose(out_f32, ref, atol=1e-4, rtol=1e-4)

    # Case 3: ragged spatial extent + MXU matmul1 path (C > 8) + N == 1 tile
    # split (exercises boundary masking and the >=2-grid-steps logic).
    N3, c3, H3, W3, of3 = 1, 16, 20, 20, 8
    x3 = jax.random.normal(k2, (N3, c3, H3, W3), dtype=jnp.float32)
    w13, b13, w23, b23 = _make_params(k3, c3, of3)
    ref3 = lin2d_reference(x3, w13, b13, w23, b23)
    out3 = jax.block_until_ready(lin2d_pallas(x3, w13, b13, w23, b23))
    assert out3.shape == (N3, of3, H3, W3)
    assert jnp.allclose(out3, ref3, atol=5e-2, rtol=5e-2)

    print("KERNEL_OK")
</pallas_src>

<mosaic_0001>
module attributes {stable_mosaic.version = 11 : i64} {
  func.func @lin2d_kernel(%arg0: i32, %arg1: i32, %arg2: memref<1x4x256xf32, #tpu.memory_space<vmem>>, %arg3: memref<256x4xf32, #tpu.memory_space<vmem>>, %arg4: memref<256x1xf32, #tpu.memory_space<vmem>>, %arg5: memref<8x256xbf16, #tpu.memory_space<vmem>>, %arg6: memref<8x1xf32, #tpu.memory_space<vmem>>, %arg7: memref<1x8x256xf32, #tpu.memory_space<vmem>>) attributes {dimension_semantics = [#tpu.dimension_semantics<parallel>, #tpu.dimension_semantics<parallel>], iteration_bounds = array<i64: 2, 1>, scalar_prefetch = 0 : i64, scratch_operands = 0 : i64, tpu.core_type = #tpu.core_type<tc>, window_params = [{transform_indices = @transform_0, window_bounds = array<i64: 1, 4, 256>}, {pipeline_mode = #tpu.pipeline_mode<synchronous>, transform_indices = @transform_1, window_bounds = array<i64: 256, 4>}, {pipeline_mode = #tpu.pipeline_mode<synchronous>, transform_indices = @transform_2, window_bounds = array<i64: 256, 1>}, {pipeline_mode = #tpu.pipeline_mode<synchronous>, transform_indices = @transform_3, window_bounds = array<i64: 8, 256>}, {pipeline_mode = #tpu.pipeline_mode<synchronous>, transform_indices = @transform_4, window_bounds = array<i64: 8, 1>}, {transform_indices = @transform_5, window_bounds = array<i64: 1, 8, 256>}]} {
    %c0 = arith.constant 0 : index
    %c0_0 = arith.constant 0 : index
    %c0_1 = arith.constant 0 : index
    %0 = vector.load %arg2[%c0, %c0_0, %c0_1] : memref<1x4x256xf32, #tpu.memory_space<vmem>>, vector<1x4x256xf32>
    %1 = vector.shape_cast %0 : vector<1x4x256xf32> to vector<4x256xf32>
    %c0_2 = arith.constant 0 : index
    %c0_3 = arith.constant 0 : index
    %2 = vector.load %arg3[%c0_2, %c0_3] : memref<256x4xf32, #tpu.memory_space<vmem>>, vector<128x4xf32>
    %c0_4 = arith.constant 0 : index
    %c0_5 = arith.constant 0 : index
    %3 = vector.load %arg4[%c0_4, %c0_5] : memref<256x1xf32, #tpu.memory_space<vmem>>, vector<128x1xf32>
    %4 = vector.extract_strided_slice %2 {offsets = [0, 0], sizes = [128, 1], strides = [1, 1]} : vector<128x4xf32> to vector<128x1xf32>
    %5 = vector.extract_strided_slice %1 {offsets = [0, 0], sizes = [1, 256], strides = [1, 1]} : vector<4x256xf32> to vector<1x256xf32>
    %6 = vector.broadcast %4 : vector<128x1xf32> to vector<128x256xf32>
    %7 = vector.broadcast %5 : vector<1x256xf32> to vector<128x256xf32>
    %8 = arith.mulf %6, %7 : vector<128x256xf32>
    %9 = vector.broadcast %3 : vector<128x1xf32> to vector<128x256xf32>
    %10 = arith.addf %9, %8 : vector<128x256xf32>
    %11 = vector.extract_strided_slice %2 {offsets = [0, 1], sizes = [128, 1], strides = [1, 1]} : vector<128x4xf32> to vector<128x1xf32>
    %12 = vector.extract_strided_slice %1 {offsets = [1, 0], sizes = [1, 256], strides = [1, 1]} : vector<4x256xf32> to vector<1x256xf32>
    %13 = vector.broadcast %11 : vector<128x1xf32> to vector<128x256xf32>
    %14 = vector.broadcast %12 : vector<1x256xf32> to vector<128x256xf32>
    %15 = arith.mulf %13, %14 : vector<128x256xf32>
    %16 = arith.addf %10, %15 : vector<128x256xf32>
    %17 = vector.extract_strided_slice %2 {offsets = [0, 2], sizes = [128, 1], strides = [1, 1]} : vector<128x4xf32> to vector<128x1xf32>
    %18 = vector.extract_strided_slice %1 {offsets = [2, 0], sizes = [1, 256], strides = [1, 1]} : vector<4x256xf32> to vector<1x256xf32>
    %19 = vector.broadcast %17 : vector<128x1xf32> to vector<128x256xf32>
    %20 = vector.broadcast %18 : vector<1x256xf32> to vector<128x256xf32>
    %21 = arith.mulf %19, %20 : vector<128x256xf32>
    %22 = arith.addf %16, %21 : vector<128x256xf32>
    %23 = vector.extract_strided_slice %2 {offsets = [0, 3], sizes = [128, 1], strides = [1, 1]} : vector<128x4xf32> to vector<128x1xf32>
    %24 = vector.extract_strided_slice %1 {offsets = [3, 0], sizes = [1, 256], strides = [1, 1]} : vector<4x256xf32> to vector<1x256xf32>
    %25 = vector.broadcast %23 : vector<128x1xf32> to vector<128x256xf32>
    %26 = vector.broadcast %24 : vector<1x256xf32> to vector<128x256xf32>
    %27 = arith.mulf %25, %26 : vector<128x256xf32>
    %28 = arith.addf %22, %27 : vector<128x256xf32>
    %cst = arith.constant 0.000000e+00 : f32
    %29 = vector.broadcast %cst : f32 to vector<128x256xf32>
    %30 = arith.maximumf %28, %29 : vector<128x256xf32>
    %c0_6 = arith.constant 0 : index
    %c0_7 = arith.constant 0 : index
    %31 = vector.load %arg5[%c0_6, %c0_7] : memref<8x256xbf16, #tpu.memory_space<vmem>>, vector<8x128xbf16>
    %32 = arith.truncf %30 : vector<128x256xf32> to vector<128x256xbf16>
    %cst_8 = arith.constant dense<0.000000e+00> : vector<8x256xf32>
    %33 = tpu.matmul %31, %32, %cst_8 {dimension_numbers = #tpu.dot_dimension_numbers<[1], [0], [0], [1], [0, 0, 1, 1], [], []>} : vector<8x128xbf16>, vector<128x256xbf16>, vector<8x256xf32> -> vector<8x256xf32>
    %c128 = arith.constant 128 : index
    %c0_9 = arith.constant 0 : index
    %34 = vector.load %arg3[%c128, %c0_9] : memref<256x4xf32, #tpu.memory_space<vmem>>, vector<128x4xf32>
    %c128_10 = arith.constant 128 : index
    %c0_11 = arith.constant 0 : index
    %35 = vector.load %arg4[%c128_10, %c0_11] : memref<256x1xf32, #tpu.memory_space<vmem>>, vector<128x1xf32>
    %36 = vector.extract_strided_slice %34 {offsets = [0, 0], sizes = [128, 1], strides = [1, 1]} : vector<128x4xf32> to vector<128x1xf32>
    %37 = vector.extract_strided_slice %1 {offsets = [0, 0], sizes = [1, 256], strides = [1, 1]} : vector<4x256xf32> to vector<1x256xf32>
    %38 = vector.broadcast %36 : vector<128x1xf32> to vector<128x256xf32>
    %39 = vector.broadcast %37 : vector<1x256xf32> to vector<128x256xf32>
    %40 = arith.mulf %38, %39 : vector<128x256xf32>
    %41 = vector.broadcast %35 : vector<128x1xf32> to vector<128x256xf32>
    %42 = arith.addf %41, %40 : vector<128x256xf32>
    %43 = vector.extract_strided_slice %34 {offsets = [0, 1], sizes = [128, 1], strides = [1, 1]} : vector<128x4xf32> to vector<128x1xf32>
    %44 = vector.extract_strided_slice %1 {offsets = [1, 0], sizes = [1, 256], strides = [1, 1]} : vector<4x256xf32> to vector<1x256xf32>
    %45 = vector.broadcast %43 : vector<128x1xf32> to vector<128x256xf32>
    %46 = vector.broadcast %44 : vector<1x256xf32> to vector<128x256xf32>
    %47 = arith.mulf %45, %46 : vector<128x256xf32>
    %48 = arith.addf %42, %47 : vector<128x256xf32>
    %49 = vector.extract_strided_slice %34 {offsets = [0, 2], sizes = [128, 1], strides = [1, 1]} : vector<128x4xf32> to vector<128x1xf32>
    %50 = vector.extract_strided_slice %1 {offsets = [2, 0], sizes = [1, 256], strides = [1, 1]} : vector<4x256xf32> to vector<1x256xf32>
    %51 = vector.broadcast %49 : vector<128x1xf32> to vector<128x256xf32>
    %52 = vector.broadcast %50 : vector<1x256xf32> to vector<128x256xf32>
    %53 = arith.mulf %51, %52 : vector<128x256xf32>
    %54 = arith.addf %48, %53 : vector<128x256xf32>
    %55 = vector.extract_strided_slice %34 {offsets = [0, 3], sizes = [128, 1], strides = [1, 1]} : vector<128x4xf32> to vector<128x1xf32>
    %56 = vector.extract_strided_slice %1 {offsets = [3, 0], sizes = [1, 256], strides = [1, 1]} : vector<4x256xf32> to vector<1x256xf32>
    %57 = vector.broadcast %55 : vector<128x1xf32> to vector<128x256xf32>
    %58 = vector.broadcast %56 : vector<1x256xf32> to vector<128x256xf32>
    %59 = arith.mulf %57, %58 : vector<128x256xf32>
    %60 = arith.addf %54, %59 : vector<128x256xf32>
    %cst_12 = arith.constant 0.000000e+00 : f32
    %61 = vector.broadcast %cst_12 : f32 to vector<128x256xf32>
    %62 = arith.maximumf %60, %61 : vector<128x256xf32>
    %c0_13 = arith.constant 0 : index
    %c128_14 = arith.constant 128 : index
    %63 = vector.load %arg5[%c0_13, %c128_14] : memref<8x256xbf16, #tpu.memory_space<vmem>>, vector<8x128xbf16>
    %64 = arith.truncf %62 : vector<128x256xf32> to vector<128x256xbf16>
    %cst_15 = arith.constant dense<0.000000e+00> : vector<8x256xf32>
    %65 = tpu.matmul %63, %64, %cst_15 {dimension_numbers = #tpu.dot_dimension_numbers<[1], [0], [0], [1], [0, 0, 1, 1], [], []>} : vector<8x128xbf16>, vector<128x256xbf16>, vector<8x256xf32> -> vector<8x256xf32>
    %66 = arith.addf %33, %65 : vector<8x256xf32>
    %c0_16 = arith.constant 0 : index
    %c0_17 = arith.constant 0 : index
    %67 = vector.load %arg6[%c0_16, %c0_17] : memref<8x1xf32, #tpu.memory_space<vmem>>, vector<8x1xf32>
    %68 = vector.broadcast %67 : vector<8x1xf32> to vector<8x256xf32>
    %69 = arith.addf %66, %68 : vector<8x256xf32>
    %c0_18 = arith.constant 0 : index
    %c0_19 = arith.constant 0 : index
    %c0_20 = arith.constant 0 : index
    %70 = vector.load %arg7[%c0_18, %c0_19, %c0_20] : memref<1x8x256xf32, #tpu.memory_space<vmem>>, vector<1x8x256xf32>
    %71 = vector.shape_cast %70 : vector<1x8x256xf32> to vector<8x256xf32>
    %72 = vector.shape_cast %69 : vector<8x256xf32> to vector<1x8x256xf32>
    tpu.vector_store %arg7[%c0_18, %c0_19, %c0_20], %72 {strides = array<i32>} : memref<1x8x256xf32, #tpu.memory_space<vmem>>, vector<1x8x256xf32>,
    return
  }
  func.func @transform_0(%arg0: i32, %arg1: i32) -> (i32, i32, i32) {
    %c0_i32 = arith.constant 0 : i32
    %c0_i32_0 = arith.constant 0 : i32
    return %arg0, %c0_i32, %arg1 : i32, i32, i32
  }
  func.func @transform_1(%arg0: i32, %arg1: i32) -> (i32, i32) {
    %c0_i32 = arith.constant 0 : i32
    %c0_i32_0 = arith.constant 0 : i32
    %c0_i32_1 = arith.constant 0 : i32
    return %c0_i32, %c0_i32_0 : i32, i32
  }
  func.func @transform_2(%arg0: i32, %arg1: i32) -> (i32, i32) {
    %c0_i32 = arith.constant 0 : i32
    %c0_i32_0 = arith.constant 0 : i32
    %c0_i32_1 = arith.constant 0 : i32
    return %c0_i32, %c0_i32_0 : i32, i32
  }
  func.func @transform_3(%arg0: i32, %arg1: i32) -> (i32, i32) {
    %c0_i32 = arith.constant 0 : i32
    %c0_i32_0 = arith.constant 0 : i32
    %c0_i32_1 = arith.constant 0 : i32
    return %c0_i32, %c0_i32_0 : i32, i32
  }
  func.func @transform_4(%arg0: i32, %arg1: i32) -> (i32, i32) {
    %c0_i32 = arith.constant 0 : i32
    %c0_i32_0 = arith.constant 0 : i32
    %c0_i32_1 = arith.constant 0 : i32
    return %c0_i32, %c0_i32_0 : i32, i32
  }
  func.func @transform_5(%arg0: i32, %arg1: i32) -> (i32, i32, i32) {
    %c0_i32 = arith.constant 0 : i32
    %c0_i32_0 = arith.constant 0 : i32
    return %arg0, %c0_i32, %arg1 : i32, i32, i32
  }
}

</mosaic_0001>

<llo_original>
// kernel: tpu_custom_call.1
$region0: #{tpu_custom_call.1}
  #allocation0 [shape = 'u32[]', space=smem, size = 0x4, offset = 0x4, fixed_abs, tag = 'smem constant byte address 0x4 - core index']
  #allocation1 [shape = 'u32[144,128]{1,0:T(1,128)}', space=vmem, size = 0x12000, scoped, tag = 'internal scratch']
  %s0 = inlined_call_operand.vmem [shape: f32[2,4,256], index: 0, kind: input, shape index: {}]
  %s1 = inlined_call_operand.vmem [shape: f32[256,4], index: 1, kind: input, shape index: {}]
  %s2 = inlined_call_operand.vmem [shape: f32[256,1], index: 2, kind: input, shape index: {}]
  %s3 = inlined_call_operand.vmem [shape: bf16[8,256], index: 3, kind: input, shape index: {}]
  %s4 = inlined_call_operand.vmem [shape: f32[8,1], index: 4, kind: input, shape index: {}]
  %s5 = inlined_call_operand.hbm [shape: f32[2,8,256], index: 5, kind: output, shape index: {}]
  %s6 = sld [smem:[#allocation0]]
  $region53: #{tpu_custom_call.1} parent=0
    _
  %s8 = ssub.s32 1, %s6
  %s9 = scalar_select 0, %s8, %s6
  $region1: #{tpu_custom_call.1} parent=0
    #allocation2 [shape = 'u8[16384]{0}', space=vmem, size = 0x4000, scoped, tag = 'output window, operand 0']
    #allocation3 [shape = 's32[2]{0}', space=sflag, size = 0x8, scoped, tag = 'scoped memory for tpu_custom_call.1']
    %10 = vsyncpa [#allocation3], 0
    %s11 = scalar_lea.sflag [#allocation3], 1
    %12 = vsyncpa %s11, 0
    loop: start=0, step=1, limit=4
    $region2: #{tpu_custom_call.1} parent=1 // loop_pre_header
      _
    $region3: #{tpu_custom_call.1} parent=1 // loop_header
      %s14 = sphi 0, %s18
      %p15 = scmp.ge.s32.totalorder %s14, 4
      %s21 = sphi 0, %s33
      %s22 = sphi 0, %s29
      %s23 = sphi 0, %s21
      %s24 = sphi 0, %s22
      %s25 = sphi 0, %s23
      %s26 = sphi 0, %s24
      %s38 = sphi 0, %s40
      %s41 = sphi 0, %s38
      %s42 = sphi 0, %s41
      %s58 = sphi 0, %s42
      %s62 = sphi 0, %s62
      %s64 = sphi 0, %s62
      %s65 = sphi 0, %s64
      %s79 = sphi 0, %s65
      %s83 = sphi 0, %s83
      %s85 = sphi 0, %s83
      %s86 = sphi 0, %s85
      %s100 = sphi 0, %s86
      %s104 = sphi 0, %s104
      %s106 = sphi 0, %s104
      %s107 = sphi 0, %s106
      %s121 = sphi 0, %s107
      %s125 = sphi 0, %s125
      %s127 = sphi 0, %s125
      %s128 = sphi 0, %s127
      %s142 = sphi 0, %s128
      %s150 = sphi 0, %s152
      %s153 = sphi 0, %s150
      %s154 = sphi 0, %s153
      %s170 = sphi 0, %s154
    $region4: #{tpu_custom_call.1} parent=1 // loop_header_branch
      %17 = sbr.rel (%p15) target = $region8
    $region5: #{tpu_custom_call.1} parent=1 // loop_body
      %s19 = ssub.s32 %s14, 1
      %s20 = ssub.s32 %s14, 2
      %s27 = sadd.s32 1, %s22
      %p28 = scmp.ge.s32.totalorder %s27, 1
      %s29 = scalar_select %p28, 0, %s27
      %s30 = sadd.s32 1, %s21
      %s31 = scalar_select %p28, %s30, %s21
      %p32 = scmp.ge.s32.totalorder %s31, 2
      %s33 = scalar_select %p32, 0, %s31
      %s34 = ssub.s32 %s21, %s33
      %s35 = ssub.s32 %s22, %s29
      %s36 = sor.u32 %s34, %s35
      %p37 = scmp.eq.s32.totalorder %s36, 0
      %s39 = sadd.s32 %s38, 1
      %s40 = scalar_select %p37, %s38, %s39
      %p43 = pneg %p37
      %p44 = scmp.eq.s32.totalorder %s14, 1
      %p45 = por %p43, %p44
      %p46 = scmp.ne.s32.totalorder %s38, %s41
      %p47 = scmp.eq.s32.totalorder %s14, 0
      %p48 = por %p46, %p47
      %p49 = scmp.ne.s32.totalorder %s38, %s41
      %p50 = scmp.eq.s32.totalorder %s19, 1
      %p51 = por %p49, %p50
      %p52 = scmp.ne.s32.totalorder %s41, %s42
      %p53 = scmp.eq.s32.totalorder %s19, 0
      %p54 = por %p52, %p53
      %p55 = scmp.ne.s32.totalorder %s41, %s42
      %p56 = scmp.eq.s32.totalorder %s20, 1
      %p57 = por %p55, %p56
      %p59 = scmp.ne.s32.totalorder %s42, %s58
      %p60 = scmp.eq.s32.totalorder %s20, 0
      %p61 = por %p59, %p60
      %s63 = sadd.s32 %s62, 1
      %p66 = scmp.eq.s32.totalorder %s14, 1
      %p67 = scmp.ne.s32.totalorder %s62, %s64
      %p68 = scmp.eq.s32.totalorder %s14, 0
      %p69 = por %p67, %p68
      %p70 = scmp.ne.s32.totalorder %s62, %s64
      %p71 = scmp.eq.s32.totalorder %s19, 1
      %p72 = por %p70, %p71
      %p73 = scmp.ne.s32.totalorder %s64, %s65
      %p74 = scmp.eq.s32.totalorder %s19, 0
      %p75 = por %p73, %p74
      %p76 = scmp.ne.s32.totalorder %s64, %s65
      %p77 = scmp.eq.s32.totalorder %s20, 1
      %p78 = por %p76, %p77
      %p80 = scmp.ne.s32.totalorder %s65, %s79
      %p81 = scmp.eq.s32.totalorder %s20, 0
      %p82 = por %p80, %p81
      %s84 = sadd.s32 %s83, 1
      %p87 = scmp.eq.s32.totalorder %s14, 1
      %p88 = scmp.ne.s32.totalorder %s83, %s85
      %p89 = scmp.eq.s32.totalorder %s14, 0
      %p90 = por %p88, %p89
      %p91 = scmp.ne.s32.totalorder %s83, %s85
      %p92 = scmp.eq.s32.totalorder %s19, 1
      %p93 = por %p91, %p92
      %p94 = scmp.ne.s32.totalorder %s85, %s86
      %p95 = scmp.eq.s32.totalorder %s19, 0
      %p96 = por %p94, %p95
      %p97 = scmp.ne.s32.totalorder %s85, %s86
      %p98 = scmp.eq.s32.totalorder %s20, 1
      %p99 = por %p97, %p98
      %p101 = scmp.ne.s32.totalorder %s86, %s100
      %p102 = scmp.eq.s32.totalorder %s20, 0
      %p103 = por %p101, %p102
      %s105 = sadd.s32 %s104, 1
      %p108 = scmp.eq.s32.totalorder %s14, 1
      %p109 = scmp.ne.s32.totalorder %s104, %s106
      %p110 = scmp.eq.s32.totalorder %s14, 0
      %p111 = por %p109, %p110
      %p112 = scmp.ne.s32.totalorder %s104, %s106
      %p113 = scmp.eq.s32.totalorder %s19, 1
      %p114 = por %p112, %p113
      %p115 = scmp.ne.s32.totalorder %s106, %s107
      %p116 = scmp.eq.s32.totalorder %s19, 0
      %p117 = por %p115, %p116
      %p118 = scmp.ne.s32.totalorder %s106, %s107
      %p119 = scmp.eq.s32.totalorder %s20, 1
      %p120 = por %p118, %p119
      %p122 = scmp.ne.s32.totalorder %s107, %s121
      %p123 = scmp.eq.s32.totalorder %s20, 0
      %p124 = por %p122, %p123
      %s126 = sadd.s32 %s125, 1
      %p129 = scmp.eq.s32.totalorder %s14, 1
      %p130 = scmp.ne.s32.totalorder %s125, %s127
      %p131 = scmp.eq.s32.totalorder %s14, 0
      %p132 = por %p130, %p131
      %p133 = scmp.ne.s32.totalorder %s125, %s127
      %p134 = scmp.eq.s32.totalorder %s19, 1
      %p135 = por %p133, %p134
      %p136 = scmp.ne.s32.totalorder %s127, %s128
      %p137 = scmp.eq.s32.totalorder %s19, 0
      %p138 = por %p136, %p137
      %p139 = scmp.ne.s32.totalorder %s127, %s128
      %p140 = scmp.eq.s32.totalorder %s20, 1
      %p141 = por %p139, %p140
      %p143 = scmp.ne.s32.totalorder %s128, %s142
      %p144 = scmp.eq.s32.totalorder %s20, 0
      %p145 = por %p143, %p144
      %s146 = ssub.s32 %s21, %s33
      %s147 = ssub.s32 %s22, %s29
      %s148 = sor.u32 %s146, %s147
      %p149 = scmp.eq.s32.totalorder %s148, 0
      %s151 = sadd.s32 %s150, 1
      %s152 = scalar_select %p149, %s150, %s151
      %p155 = pneg %p149
      %p156 = scmp.eq.s32.totalorder %s14, 1
      %p157 = por %p155, %p156
      %p158 = scmp.ne.s32.totalorder %s150, %s153
      %p159 = scmp.eq.s32.totalorder %s14, 0
      %p160 = por %p158, %p159
      %p161 = scmp.ne.s32.totalorder %s150, %s153
      %p162 = scmp.eq.s32.totalorder %s19, 1
      %p163 = por %p161, %p162
      %p164 = scmp.ne.s32.totalorder %s153, %s154
      %p165 = scmp.eq.s32.totalorder %s19, 0
      %p166 = por %p164, %p165
      %p167 = scmp.ne.s32.totalorder %s153, %s154
      %p168 = scmp.eq.s32.totalorder %s20, 1
      %p169 = por %p167, %p168
      %p171 = scmp.ne.s32.totalorder %s154, %s170
      %p172 = scmp.eq.s32.totalorder %s20, 0
      %p173 = por %p171, %p172
      %p174 = scmp.le.s32.totalorder 1, %s14
      %p175 = scmp.lt.s32.totalorder %s14, 3
      %p176 = pnand %p174, %p175
      %p177 = pneg %p176
      // Predicated region
      $region9: #{tpu_custom_call.1} parent=5 // pred_check
        _
      $region10: #{tpu_custom_call.1} parent=5 // pred_check_branch
        %179 = sbr.rel (%p176) target = $region12
      $region11: #{tpu_custom_call.1} parent=5 // pred_region
        %s180 = ssub.s32 %s14, 1
        // Predicated region
        $region13: #{tpu_custom_call.1} parent=11 // pred_check
          %p181 = pneg %p75
        $region14: #{tpu_custom_call.1} parent=11 // pred_check_branch
          %183 = sbr.rel (%p181) target = $region16
        $region15: #{tpu_custom_call.1} parent=11 // pred_region
          _
        $region16: #{tpu_custom_call.1} parent=11 // pred_fallthru
          _
        // Predicated region
        $region17: #{tpu_custom_call.1} parent=11 // pred_check
          %p184 = pneg %p96
        $region18: #{tpu_custom_call.1} parent=11 // pred_check_branch
          %186 = sbr.rel (%p184) target = $region20
        $region19: #{tpu_custom_call.1} parent=11 // pred_region
          _
        $region20: #{tpu_custom_call.1} parent=11 // pred_fallthru
          _
        // Predicated region
        $region21: #{tpu_custom_call.1} parent=11 // pred_check
          %p187 = pneg %p117
        $region22: #{tpu_custom_call.1} parent=11 // pred_check_branch
          %189 = sbr.rel (%p187) target = $region24
        $region23: #{tpu_custom_call.1} parent=11 // pred_region
          _
        $region24: #{tpu_custom_call.1} parent=11 // pred_fallthru
          _
        // Predicated region
        $region25: #{tpu_custom_call.1} parent=11 // pred_check
          %p190 = pneg %p138
        $region26: #{tpu_custom_call.1} parent=11 // pred_check_branch
          %192 = sbr.rel (%p190) target = $region28
        $region27: #{tpu_custom_call.1} parent=11 // pred_region
          _
        $region28: #{tpu_custom_call.1} parent=11 // pred_fallthru
          _
      $region12: #{tpu_custom_call.1} parent=5 // pred_fallthru
        _
      %p193 = scmp.lt.s32.totalorder %s14, 2
      // Predicated region
      $region29: #{tpu_custom_call.1} parent=5 // pred_check
        %p194 = pneg %p193
      $region30: #{tpu_custom_call.1} parent=5 // pred_check_branch
        %196 = sbr.rel (%p194) target = $region32
      $region31: #{tpu_custom_call.1} parent=5 // pred_region
        // Predicated region
        $region33: #{tpu_custom_call.1} parent=31 // pred_check
          %p197 = pneg %p48
        $region34: #{tpu_custom_call.1} parent=31 // pred_check_branch
          %199 = sbr.rel (%p197) target = $region36
        $region35: #{tpu_custom_call.1} parent=31 // pred_region
          %s200 = smul.u32 2, %s22
          %p201 = scmp.lt.s32.totalorder %s21, 1
          %s202 = scalar_select %p201, %s21, 1
          %p203 = scmp.lt.s32.totalorder %s200, 1
          %s204 = scalar_select %p203, %s200, 1
          %s205 = smul.addr %s202, 2
          %s206 = sadd.s32 %s204, %s205
          %s207 = smul.addr %s206, 4
          %s208 = scalar_lea.vmem %s0, %s207
          %s209 = smul.u32 2, %s22
        $region36: #{tpu_custom_call.1} parent=31 // pred_fallthru
          _
      $region32: #{tpu_custom_call.1} parent=5 // pred_fallthru
        _
      %p210 = scmp.le.s32.totalorder 1, %s14
      %p211 = scmp.lt.s32.totalorder %s14, 3
      %p212 = pnand %p210, %p211
      %p213 = pneg %p212
      // Predicated region
      $region37: #{tpu_custom_call.1} parent=5 // pred_check
        _
      $region38: #{tpu_custom_call.1} parent=5 // pred_check_branch
        %215 = sbr.rel (%p212) target = $region40
      $region39: #{tpu_custom_call.1} parent=5 // pred_region
        %s216 = ssub.s32 %s14, 1
        %s217 = smul.u32 2, %s24
        %p218 = scmp.lt.s32.totalorder %s23, 1
        %s219 = scalar_select %p218, %s23, 1
        %p220 = scmp.lt.s32.totalorder %s217, 1
        %s221 = scalar_select %p220, %s217, 1
        %s222 = smul.addr %s219, 2
        %s223 = sadd.s32 %s221, %s222
        %s224 = smul.addr %s223, 4
        %s225 = scalar_lea.vmem %s0, %s224
        %p226 = pneg %p54
        %p227 = pneg %p51
        %p228 = pneg %p75
        %p229 = pneg %p72
        %p230 = pneg %p96
        %p231 = pneg %p93
        %p232 = pneg %p117
        %p233 = pneg %p114
        %p234 = pneg %p138
        %p235 = pneg %p135
        %p236 = pneg %p166
        %p237 = pneg %p163
        %s238 = sand.u32 %s153, 1
        %s239 = scalar_lea.sflag [#allocation3], %s238
        %s240 = sand.u32 %s153, 1
        %s241 = smul.addr %s240, 16
        %s242 = scalar_lea.vmem [#allocation2], %s241
        %s243 = smul.u32 2, %s24
        %p244 = scmp.lt.s32.totalorder %s23, 1
        %s245 = scalar_select %p244, %s23, 1
        %p246 = scmp.lt.s32.totalorder %s243, 1
        %s247 = scalar_select %p246, %s243, 1
        %s248 = smul.addr %s245, 2
        %s249 = sadd.s32 %s247, %s248
        %s250 = smul.addr %s249, 4
        %s251 = scalar_lea.vmem %s0, %s250
        %s252 = smul.u32 2, %s24
        %s253 = smul.u32 2, %s24
        %v255 = vld [vmem:[%s251] sm:$0xff]
        %v256 = vld [vmem:[%s1] sm:$0xff]
        %v257 = vld [vmem:[%s1 + $0x8] sm:$0xff]
        %v258 = vld [vmem:[%s1 + $0x10] sm:$0xff]
        %v259 = vld [vmem:[%s1 + $0x18] sm:$0xff]
        %v260 = vld [vmem:[%s1 + $0x20] sm:$0xff]
        %v261 = vld [vmem:[%s1 + $0x28] sm:$0xff]
        %v262 = vld [vmem:[%s1 + $0x30] sm:$0xff]
        %v263 = vld [vmem:[%s1 + $0x38] sm:$0xff]
        %v264 = vld [vmem:[%s1 + $0x40] sm:$0xff]
        %v265 = vld [vmem:[%s1 + $0x48] sm:$0xff]
        %v266 = vld [vmem:[%s1 + $0x50] sm:$0xff]
        %v267 = vld [vmem:[%s1 + $0x58] sm:$0xff]
        %v268 = vld [vmem:[%s1 + $0x60] sm:$0xff]
        %v269 = vld [vmem:[%s1 + $0x68] sm:$0xff]
        %v270 = vld [vmem:[%s1 + $0x70] sm:$0xff]
        %v271 = vld [vmem:[%s1 + $0x78] sm:$0xff]
        %v272 = vld [vmem:[%s2] sm:$0xff]
        %v273 = vld [vmem:[%s2 + $0x8] sm:$0xff]
        %v274 = vld [vmem:[%s2 + $0x10] sm:$0xff]
        %v275 = vld [vmem:[%s2 + $0x18] sm:$0xff]
        %v276 = vld [vmem:[%s2 + $0x20] sm:$0xff]
        %v277 = vld [vmem:[%s2 + $0x28] sm:$0xff]
        %v278 = vld [vmem:[%s2 + $0x30] sm:$0xff]
        %v279 = vld [vmem:[%s2 + $0x38] sm:$0xff]
        %v280 = vld [vmem:[%s2 + $0x40] sm:$0xff]
        %v281 = vld [vmem:[%s2 + $0x48] sm:$0xff]
        %v282 = vld [vmem:[%s2 + $0x50] sm:$0xff]
        %v283 = vld [vmem:[%s2 + $0x58] sm:$0xff]
        %v284 = vld [vmem:[%s2 + $0x60] sm:$0xff]
        %v285 = vld [vmem:[%s2 + $0x68] sm:$0xff]
        %v286 = vld [vmem:[%s2 + $0x70] sm:$0xff]
        %v287 = vld [vmem:[%s2 + $0x78] sm:$0xff]
        %289 = vset.pattern.permute.xlu0 0
        %290 = vperm.xlu0 %289, %v256
        %v291 = vpop.permute.xlu0 %290
        %294 = vset.pattern.permute.xlu0 0
        %295 = vperm.xlu0 %294, %v257
        %v296 = vpop.permute.xlu0 %295
        %299 = vset.pattern.permute.xlu0 0
        %300 = vperm.xlu0 %299, %v258
        %v301 = vpop.permute.xlu0 %300
        %304 = vset.pattern.permute.xlu0 0
        %305 = vperm.xlu0 %304, %v259
        %v306 = vpop.permute.xlu0 %305
        %309 = vset.pattern.permute.xlu0 0
        %310 = vperm.xlu0 %309, %v260
        %v311 = vpop.permute.xlu0 %310
        %314 = vset.pattern.permute.xlu0 0
        %315 = vperm.xlu0 %314, %v261
        %v316 = vpop.permute.xlu0 %315
        %319 = vset.pattern.permute.xlu0 0
        %320 = vperm.xlu0 %319, %v262
        %v321 = vpop.permute.xlu0 %320
        %324 = vset.pattern.permute.xlu0 0
        %325 = vperm.xlu0 %324, %v263
        %v326 = vpop.permute.xlu0 %325
        %329 = vset.pattern.permute.xlu0 0
        %330 = vperm.xlu0 %329, %v264
        %v331 = vpop.permute.xlu0 %330
        %334 = vset.pattern.permute.xlu0 0
        %335 = vperm.xlu0 %334, %v265
        %v336 = vpop.permute.xlu0 %335
        %339 = vset.pattern.permute.xlu0 0
        %340 = vperm.xlu0 %339, %v266
        %v341 = vpop.permute.xlu0 %340
        %344 = vset.pattern.permute.xlu0 0
        %345 = vperm.xlu0 %344, %v267
        %v346 = vpop.permute.xlu0 %345
        %349 = vset.pattern.permute.xlu0 0
        %350 = vperm.xlu0 %349, %v268
        %v351 = vpop.permute.xlu0 %350
        %354 = vset.pattern.permute.xlu0 0
        %355 = vperm.xlu0 %354, %v269
        %v356 = vpop.permute.xlu0 %355
        %359 = vset.pattern.permute.xlu0 0
        %360 = vperm.xlu0 %359, %v270
        %v361 = vpop.permute.xlu0 %360
        %364 = vset.pattern.permute.xlu0 0
        %365 = vperm.xlu0 %364, %v271
        %v366 = vpop.permute.xlu0 %365
        %v369 = vlaneseq
        %v370 = vshrl.u32 %v369, 7
        %v371 = vsub.s32 0, %v370
        %v372 = vrot.slane %v255, %v371
        %v373 = vlaneseq
        %v374 = vshrl.u32 %v373, 7
        %v375 = vsub.s32 4, %v374
        %v376 = vrot.slane %v255, %v375
        %v379 = vlaneseq
        %v380 = vshrl.u32 %v379, 7
        %v381 = vsub.s32 0, %v380
        %v382 = vrot.slane %v372, %v381
        %v383 = vlaneseq
        %v384 = vshrl.u32 %v383, 7
        %v385 = vsub.s32 0, %v384
        %v386 = vrot.slane %v376, %v385
        %v387 = vmul.f32 %v291, %v382
        %v388 = vmul.f32 %v291, %v386
        %v389 = vmul.f32 %v296, %v382
        %v390 = vmul.f32 %v296, %v386
        %v391 = vmul.f32 %v301, %v382
        %v392 = vmul.f32 %v301, %v386
        %v393 = vmul.f32 %v306, %v382
        %v394 = vmul.f32 %v306, %v386
        %v395 = vmul.f32 %v311, %v382
        %v396 = vmul.f32 %v311, %v386
        %v397 = vmul.f32 %v316, %v382
        %v398 = vmul.f32 %v316, %v386
        %v399 = vmul.f32 %v321, %v382
        %v400 = vmul.f32 %v321, %v386
        %v401 = vmul.f32 %v326, %v382
        %v402 = vmul.f32 %v326, %v386
        %v403 = vmul.f32 %v331, %v382
        %v404 = vmul.f32 %v331, %v386
        %v405 = vmul.f32 %v336, %v382
        %v406 = vmul.f32 %v336, %v386
        %v407 = vmul.f32 %v341, %v382
        %v408 = vmul.f32 %v341, %v386
        %v409 = vmul.f32 %v346, %v382
        %v410 = vmul.f32 %v346, %v386
        %v411 = vmul.f32 %v351, %v382
        %v412 = vmul.f32 %v351, %v386
        %v413 = vmul.f32 %v356, %v382
        %v414 = vmul.f32 %v356, %v386
        %v415 = vmul.f32 %v361, %v382
        %v416 = vmul.f32 %v361, %v386
        %v417 = vmul.f32 %v366, %v382
        %v418 = vmul.f32 %v366, %v386
        %420 = vset.pattern.permute.xlu0 0
        %421 = vperm.xlu0 %420, %v272
        %v422 = vpop.permute.xlu0 %421
        %425 = vset.pattern.permute.xlu0 0
        %426 = vperm.xlu0 %425, %v273
        %v427 = vpop.permute.xlu0 %426
        %430 = vset.pattern.permute.xlu0 0
        %431 = vperm.xlu0 %430, %v274
        %v432 = vpop.permute.xlu0 %431
        %435 = vset.pattern.permute.xlu0 0
        %436 = vperm.xlu0 %435, %v275
        %v437 = vpop.permute.xlu0 %436
        %440 = vset.pattern.permute.xlu0 0
        %441 = vperm.xlu0 %440, %v276
        %v442 = vpop.permute.xlu0 %441
        %445 = vset.pattern.permute.xlu0 0
        %446 = vperm.xlu0 %445, %v277
        %v447 = vpop.permute.xlu0 %446
        %450 = vset.pattern.permute.xlu0 0
        %451 = vperm.xlu0 %450, %v278
        %v452 = vpop.permute.xlu0 %451
        %455 = vset.pattern.permute.xlu0 0
        %456 = vperm.xlu0 %455, %v279
        %v457 = vpop.permute.xlu0 %456
        %460 = vset.pattern.permute.xlu0 0
        %461 = vperm.xlu0 %460, %v280
        %v462 = vpop.permute.xlu0 %461
        %465 = vset.pattern.permute.xlu0 0
        %466 = vperm.xlu0 %465, %v281
        %v467 = vpop.permute.xlu0 %466
        %470 = vset.pattern.permute.xlu0 0
        %471 = vperm.xlu0 %470, %v282
        %v472 = vpop.permute.xlu0 %471
        %475 = vset.pattern.permute.xlu0 0
        %476 = vperm.xlu0 %475, %v283
        %v477 = vpop.permute.xlu0 %476
        %480 = vset.pattern.permute.xlu0 0
        %481 = vperm.xlu0 %480, %v284
        %v482 = vpop.permute.xlu0 %481
        %485 = vset.pattern.permute.xlu0 0
        %486 = vperm.xlu0 %485, %v285
        %v487 = vpop.permute.xlu0 %486
        %490 = vset.pattern.permute.xlu0 0
        %491 = vperm.xlu0 %490, %v286
        %v492 = vpop.permute.xlu0 %491
        %495 = vset.pattern.permute.xlu0 0
        %496 = vperm.xlu0 %495, %v287
        %v497 = vpop.permute.xlu0 %496
        %v499 = vadd.f32 %v422, %v387
        %v500 = vadd.f32 %v422, %v388
        %v501 = vadd.f32 %v427, %v389
        %v502 = vadd.f32 %v427, %v390
        %v503 = vadd.f32 %v432, %v391
        %v504 = vadd.f32 %v432, %v392
        %v505 = vadd.f32 %v437, %v393
        %v506 = vadd.f32 %v437, %v394
        %v507 = vadd.f32 %v442, %v395
        %v508 = vadd.f32 %v442, %v396
        %v509 = vadd.f32 %v447, %v397
        %v510 = vadd.f32 %v447, %v398
        %v511 = vadd.f32 %v452, %v399
        %v512 = vadd.f32 %v452, %v400
        %v513 = vadd.f32 %v457, %v401
        %v514 = vadd.f32 %v457, %v402
        %v515 = vadd.f32 %v462, %v403
        %v516 = vadd.f32 %v462, %v404
        %v517 = vadd.f32 %v467, %v405
        %v518 = vadd.f32 %v467, %v406
        %v519 = vadd.f32 %v472, %v407
        %v520 = vadd.f32 %v472, %v408
        %v521 = vadd.f32 %v477, %v409
        %v522 = vadd.f32 %v477, %v410
        %v523 = vadd.f32 %v482, %v411
        %v524 = vadd.f32 %v482, %v412
        %v525 = vadd.f32 %v487, %v413
        %v526 = vadd.f32 %v487, %v414
        %v527 = vadd.f32 %v492, %v415
        %v528 = vadd.f32 %v492, %v416
        %v529 = vadd.f32 %v497, %v417
        %v530 = vadd.f32 %v497, %v418
        %531 = vset.pattern.permute.xlu0 1
        %532 = vperm.xlu0 %531, %v256
        %v533 = vpop.permute.xlu0 %532
        %535 = vset.pattern.permute.xlu0 1
        %536 = vperm.xlu0 %535, %v257
        %v537 = vpop.permute.xlu0 %536
        %539 = vset.pattern.permute.xlu0 1
        %540 = vperm.xlu0 %539, %v258
        %v541 = vpop.permute.xlu0 %540
        %543 = vset.pattern.permute.xlu0 1
        %544 = vperm.xlu0 %543, %v259
        %v545 = vpop.permute.xlu0 %544
        %547 = vset.pattern.permute.xlu0 1
        %548 = vperm.xlu0 %547, %v260
        %v549 = vpop.permute.xlu0 %548
        %551 = vset.pattern.permute.xlu0 1
        %552 = vperm.xlu0 %551, %v261
        %v553 = vpop.permute.xlu0 %552
        %555 = vset.pattern.permute.xlu0 1
        %556 = vperm.xlu0 %555, %v262
        %v557 = vpop.permute.xlu0 %556
        %559 = vset.pattern.permute.xlu0 1
        %560 = vperm.xlu0 %559, %v263
        %v561 = vpop.permute.xlu0 %560
        %563 = vset.pattern.permute.xlu0 1
        %564 = vperm.xlu0 %563, %v264
        %v565 = vpop.permute.xlu0 %564
        %567 = vset.pattern.permute.xlu0 1
        %568 = vperm.xlu0 %567, %v265
        %v569 = vpop.permute.xlu0 %568
        %571 = vset.pattern.permute.xlu0 1
        %572 = vperm.xlu0 %571, %v266
        %v573 = vpop.permute.xlu0 %572
        %575 = vset.pattern.permute.xlu0 1
        %576 = vperm.xlu0 %575, %v267
        %v577 = vpop.permute.xlu0 %576
        %579 = vset.pattern.permute.xlu0 1
        %580 = vperm.xlu0 %579, %v268
        %v581 = vpop.permute.xlu0 %580
        %583 = vset.pattern.permute.xlu0 1
        %584 = vperm.xlu0 %583, %v269
        %v585 = vpop.permute.xlu0 %584
        %587 = vset.pattern.permute.xlu0 1
        %588 = vperm.xlu0 %587, %v270
        %v589 = vpop.permute.xlu0 %588
        %591 = vset.pattern.permute.xlu0 1
        %592 = vperm.xlu0 %591, %v271
        %v593 = vpop.permute.xlu0 %592
        %v595 = vlaneseq
        %v596 = vshrl.u32 %v595, 7
        %v597 = vsub.s32 1, %v596
        %v598 = vrot.slane %v255, %v597
        %v599 = vlaneseq
        %v600 = vshrl.u32 %v599, 7
        %v601 = vsub.s32 5, %v600
        %v602 = vrot.slane %v255, %v601
        %v605 = vlaneseq
        %v606 = vshrl.u32 %v605, 7
        %v607 = vsub.s32 1, %v606
        %v608 = vrot.slane %v598, %v607
        %v609 = vlaneseq
        %v610 = vshrl.u32 %v609, 7
        %v611 = vsub.s32 1, %v610
        %v612 = vrot.slane %v602, %v611
        %v613 = vmul.f32 %v533, %v608
        %v614 = vmul.f32 %v533, %v612
        %v615 = vmul.f32 %v537, %v608
        %v616 = vmul.f32 %v537, %v612
        %v617 = vmul.f32 %v541, %v608
        %v618 = vmul.f32 %v541, %v612
        %v619 = vmul.f32 %v545, %v608
        %v620 = vmul.f32 %v545, %v612
        %v621 = vmul.f32 %v549, %v608
        %v622 = vmul.f32 %v549, %v612
        %v623 = vmul.f32 %v553, %v608
        %v624 = vmul.f32 %v553, %v612
        %v625 = vmul.f32 %v557, %v608
        %v626 = vmul.f32 %v557, %v612
        %v627 = vmul.f32 %v561, %v608
        %v628 = vmul.f32 %v561, %v612
        %v629 = vmul.f32 %v565, %v608
        %v630 = vmul.f32 %v565, %v612
        %v631 = vmul.f32 %v569, %v608
        %v632 = vmul.f32 %v569, %v612
        %v633 = vmul.f32 %v573, %v608
        %v634 = vmul.f32 %v573, %v612
        %v635 = vmul.f32 %v577, %v608
        %v636 = vmul.f32 %v577, %v612
        %v637 = vmul.f32 %v581, %v608
        %v638 = vmul.f32 %v581, %v612
        %v639 = vmul.f32 %v585, %v608
        %v640 = vmul.f32 %v585, %v612
        %v641 = vmul.f32 %v589, %v608
        %v642 = vmul.f32 %v589, %v612
        %v643 = vmul.f32 %v593, %v608
        %v644 = vmul.f32 %v593, %v612
        %v645 = vadd.f32 %v499, %v613
        %v646 = vadd.f32 %v500, %v614
        %v647 = vadd.f32 %v501, %v615
        %v648 = vadd.f32 %v502, %v616
        %v649 = vadd.f32 %v503, %v617
        %v650 = vadd.f32 %v504, %v618
        %v651 = vadd.f32 %v505, %v619
        %v652 = vadd.f32 %v506, %v620
        %v653 = vadd.f32 %v507, %v621
        %v654 = vadd.f32 %v508, %v622
        %v655 = vadd.f32 %v509, %v623
        %v656 = vadd.f32 %v510, %v624
        %v657 = vadd.f32 %v511, %v625
        %v658 = vadd.f32 %v512, %v626
        %v659 = vadd.f32 %v513, %v627
        %v660 = vadd.f32 %v514, %v628
        %v661 = vadd.f32 %v515, %v629
        %v662 = vadd.f32 %v516, %v630
        %v663 = vadd.f32 %v517, %v631
        %v664 = vadd.f32 %v518, %v632
        %v665 = vadd.f32 %v519, %v633
        %v666 = vadd.f32 %v520, %v634
        %v667 = vadd.f32 %v521, %v635
        %v668 = vadd.f32 %v522, %v636
        %v669 = vadd.f32 %v523, %v637
        %v670 = vadd.f32 %v524, %v638
        %v671 = vadd.f32 %v525, %v639
        %v672 = vadd.f32 %v526, %v640
        %v673 = vadd.f32 %v527, %v641
        %v674 = vadd.f32 %v528, %v642
        %v675 = vadd.f32 %v529, %v643
        %v676 = vadd.f32 %v530, %v644
        %677 = vset.pattern.permute.xlu0 2
        %678 = vperm.xlu0 %677, %v256
        %v679 = vpop.permute.xlu0 %678
        %681 = vset.pattern.permute.xlu0 2
        %682 = vperm.xlu0 %681, %v257
        %v683 = vpop.permute.xlu0 %682
        %685 = vset.pattern.permute.xlu0 2
        %686 = vperm.xlu0 %685, %v258
        %v687 = vpop.permute.xlu0 %686
        %689 = vset.pattern.permute.xlu0 2
        %690 = vperm.xlu0 %689, %v259
        %v691 = vpop.permute.xlu0 %690
        %693 = vset.pattern.permute.xlu0 2
        %694 = vperm.xlu0 %693, %v260
        %v695 = vpop.permute.xlu0 %694
        %697 = vset.pattern.permute.xlu0 2
        %698 = vperm.xlu0 %697, %v261
        %v699 = vpop.permute.xlu0 %698
        %701 = vset.pattern.permute.xlu0 2
        %702 = vperm.xlu0 %701, %v262
        %v703 = vpop.permute.xlu0 %702
        %705 = vset.pattern.permute.xlu0 2
        %706 = vperm.xlu0 %705, %v263
        %v707 = vpop.permute.xlu0 %706
        %709 = vset.pattern.permute.xlu0 2
        %710 = vperm.xlu0 %709, %v264
        %v711 = vpop.permute.xlu0 %710
        %713 = vset.pattern.permute.xlu0 2
        %714 = vperm.xlu0 %713, %v265
        %v715 = vpop.permute.xlu0 %714
        %717 = vset.pattern.permute.xlu0 2
        %718 = vperm.xlu0 %717, %v266
        %v719 = vpop.permute.xlu0 %718
        %721 = vset.pattern.permute.xlu0 2
        %722 = vperm.xlu0 %721, %v267
        %v723 = vpop.permute.xlu0 %722
        %725 = vset.pattern.permute.xlu0 2
        %726 = vperm.xlu0 %725, %v268
        %v727 = vpop.permute.xlu0 %726
        %729 = vset.pattern.permute.xlu0 2
        %730 = vperm.xlu0 %729, %v269
        %v731 = vpop.permute.xlu0 %730
        %733 = vset.pattern.permute.xlu0 2
        %734 = vperm.xlu0 %733, %v270
        %v735 = vpop.permute.xlu0 %734
        %737 = vset.pattern.permute.xlu0 2
        %738 = vperm.xlu0 %737, %v271
        %v739 = vpop.permute.xlu0 %738
        %v741 = vlaneseq
        %v742 = vshrl.u32 %v741, 7
        %v743 = vsub.s32 2, %v742
        %v744 = vrot.slane %v255, %v743
        %v745 = vlaneseq
        %v746 = vshrl.u32 %v745, 7
        %v747 = vsub.s32 6, %v746
        %v748 = vrot.slane %v255, %v747
        %v751 = vlaneseq
        %v752 = vshrl.u32 %v751, 7
        %v753 = vsub.s32 2, %v752
        %v754 = vrot.slane %v744, %v753
        %v755 = vlaneseq
        %v756 = vshrl.u32 %v755, 7
        %v757 = vsub.s32 2, %v756
        %v758 = vrot.slane %v748, %v757
        %v759 = vmul.f32 %v679, %v754
        %v760 = vmul.f32 %v679, %v758
        %v761 = vmul.f32 %v683, %v754
        %v762 = vmul.f32 %v683, %v758
        %v763 = vmul.f32 %v687, %v754
        %v764 = vmul.f32 %v687, %v758
        %v765 = vmul.f32 %v691, %v754
        %v766 = vmul.f32 %v691, %v758
        %v767 = vmul.f32 %v695, %v754
        %v768 = vmul.f32 %v695, %v758
        %v769 = vmul.f32 %v699, %v754
        %v770 = vmul.f32 %v699, %v758
        %v771 = vmul.f32 %v703, %v754
        %v772 = vmul.f32 %v703, %v758
        %v773 = vmul.f32 %v707, %v754
        %v774 = vmul.f32 %v707, %v758
        %v775 = vmul.f32 %v711, %v754
        %v776 = vmul.f32 %v711, %v758
        %v777 = vmul.f32 %v715, %v754
        %v778 = vmul.f32 %v715, %v758
        %v779 = vmul.f32 %v719, %v754
        %v780 = vmul.f32 %v719, %v758
        %v781 = vmul.f32 %v723, %v754
        %v782 = vmul.f32 %v723, %v758
        %v783 = vmul.f32 %v727, %v754
        %v784 = vmul.f32 %v727, %v758
        %v785 = vmul.f32 %v731, %v754
        %v786 = vmul.f32 %v731, %v758
        %v787 = vmul.f32 %v735, %v754
        %v788 = vmul.f32 %v735, %v758
        %v789 = vmul.f32 %v739, %v754
        %v790 = vmul.f32 %v739, %v758
        %v791 = vadd.f32 %v645, %v759
        %v792 = vadd.f32 %v646, %v760
        %v793 = vadd.f32 %v647, %v761
        %v794 = vadd.f32 %v648, %v762
        %v795 = vadd.f32 %v649, %v763
        %v796 = vadd.f32 %v650, %v764
        %v797 = vadd.f32 %v651, %v765
        %v798 = vadd.f32 %v652, %v766
        %v799 = vadd.f32 %v653, %v767
        %v800 = vadd.f32 %v654, %v768
        %v801 = vadd.f32 %v655, %v769
        %v802 = vadd.f32 %v656, %v770
        %v803 = vadd.f32 %v657, %v771
        %v804 = vadd.f32 %v658, %v772
        %v805 = vadd.f32 %v659, %v773
        %v806 = vadd.f32 %v660, %v774
        %v807 = vadd.f32 %v661, %v775
        %v808 = vadd.f32 %v662, %v776
        %v809 = vadd.f32 %v663, %v777
        %v810 = vadd.f32 %v664, %v778
        %v811 = vadd.f32 %v665, %v779
        %v812 = vadd.f32 %v666, %v780
        %v813 = vadd.f32 %v667, %v781
        %v814 = vadd.f32 %v668, %v782
        %v815 = vadd.f32 %v669, %v783
        %v816 = vadd.f32 %v670, %v784
        %v817 = vadd.f32 %v671, %v785
        %v818 = vadd.f32 %v672, %v786
        %v819 = vadd.f32 %v673, %v787
        %v820 = vadd.f32 %v674, %v788
        %v821 = vadd.f32 %v675, %v789
        %v822 = vadd.f32 %v676, %v790
        %823 = vset.pattern.permute.xlu0 3
        %824 = vperm.xlu0 %823, %v256
        %v825 = vpop.permute.xlu0 %824
        %827 = vset.pattern.permute.xlu0 3
        %828 = vperm.xlu0 %827, %v257
        %v829 = vpop.permute.xlu0 %828
        %831 = vset.pattern.permute.xlu0 3
        %832 = vperm.xlu0 %831, %v258
        %v833 = vpop.permute.xlu0 %832
        %835 = vset.pattern.permute.xlu0 3
        %836 = vperm.xlu0 %835, %v259
        %v837 = vpop.permute.xlu0 %836
        %839 = vset.pattern.permute.xlu0 3
        %840 = vperm.xlu0 %839, %v260
        %v841 = vpop.permute.xlu0 %840
        %843 = vset.pattern.permute.xlu0 3
        %844 = vperm.xlu0 %843, %v261
        %v845 = vpop.permute.xlu0 %844
        %847 = vset.pattern.permute.xlu0 3
        %848 = vperm.xlu0 %847, %v262
        %v849 = vpop.permute.xlu0 %848
        %851 = vset.pattern.permute.xlu0 3
        %852 = vperm.xlu0 %851, %v263
        %v853 = vpop.permute.xlu0 %852
        %855 = vset.pattern.permute.xlu0 3
        %856 = vperm.xlu0 %855, %v264
        %v857 = vpop.permute.xlu0 %856
        %859 = vset.pattern.permute.xlu0 3
        %860 = vperm.xlu0 %859, %v265
        %v861 = vpop.permute.xlu0 %860
        %863 = vset.pattern.permute.xlu0 3
        %864 = vperm.xlu0 %863, %v266
        %v865 = vpop.permute.xlu0 %864
        %867 = vset.pattern.permute.xlu0 3
        %868 = vperm.xlu0 %867, %v267
        %v869 = vpop.permute.xlu0 %868
        %871 = vset.pattern.permute.xlu0 3
        %872 = vperm.xlu0 %871, %v268
        %v873 = vpop.permute.xlu0 %872
        %875 = vset.pattern.permute.xlu0 3
        %876 = vperm.xlu0 %875, %v269
        %v877 = vpop.permute.xlu0 %876
        %879 = vset.pattern.permute.xlu0 3
        %880 = vperm.xlu0 %879, %v270
        %v881 = vpop.permute.xlu0 %880
        %883 = vset.pattern.permute.xlu0 3
        %884 = vperm.xlu0 %883, %v271
        %v885 = vpop.permute.xlu0 %884
        %v887 = vlaneseq
        %v888 = vshrl.u32 %v887, 7
        %v889 = vsub.s32 3, %v888
        %v890 = vrot.slane %v255, %v889
        %v891 = vlaneseq
        %v892 = vshrl.u32 %v891, 7
        %v893 = vsub.s32 7, %v892
        %v894 = vrot.slane %v255, %v893
        %v897 = vlaneseq
        %v898 = vshrl.u32 %v897, 7
        %v899 = vsub.s32 3, %v898
        %v900 = vrot.slane %v890, %v899
        %v901 = vlaneseq
        %v902 = vshrl.u32 %v901, 7
        %v903 = vsub.s32 3, %v902
        %v904 = vrot.slane %v894, %v903
        %v905 = vmul.f32 %v825, %v900
        %v906 = vmul.f32 %v825, %v904
        %v907 = vmul.f32 %v829, %v900
        %v908 = vmul.f32 %v829, %v904
        %v909 = vmul.f32 %v833, %v900
        %v910 = vmul.f32 %v833, %v904
        %v911 = vmul.f32 %v837, %v900
        %v912 = vmul.f32 %v837, %v904
        %v913 = vmul.f32 %v841, %v900
        %v914 = vmul.f32 %v841, %v904
        %v915 = vmul.f32 %v845, %v900
        %v916 = vmul.f32 %v845, %v904
        %v917 = vmul.f32 %v849, %v900
        %v918 = vmul.f32 %v849, %v904
        %v919 = vmul.f32 %v853, %v900
        %v920 = vmul.f32 %v853, %v904
        %v921 = vmul.f32 %v857, %v900
        %v922 = vmul.f32 %v857, %v904
        %v923 = vmul.f32 %v861, %v900
        %v924 = vmul.f32 %v861, %v904
        %v925 = vmul.f32 %v865, %v900
        %v926 = vmul.f32 %v865, %v904
        %v927 = vmul.f32 %v869, %v900
        %v928 = vmul.f32 %v869, %v904
        %v929 = vmul.f32 %v873, %v900
        %v930 = vmul.f32 %v873, %v904
        %v931 = vmul.f32 %v877, %v900
        %v932 = vmul.f32 %v877, %v904
        %v933 = vmul.f32 %v881, %v900
        %v934 = vmul.f32 %v881, %v904
        %v935 = vmul.f32 %v885, %v900
        %v936 = vmul.f32 %v885, %v904
        %v937 = vadd.f32 %v791, %v905
        %v938 = vadd.f32 %v792, %v906
        %v939 = vadd.f32 %v793, %v907
        %v940 = vadd.f32 %v794, %v908
        %v941 = vadd.f32 %v795, %v909
        %v942 = vadd.f32 %v796, %v910
        %v943 = vadd.f32 %v797, %v911
        %v944 = vadd.f32 %v798, %v912
        %v945 = vadd.f32 %v799, %v913
        %v946 = vadd.f32 %v800, %v914
        %v947 = vadd.f32 %v801, %v915
        %v948 = vadd.f32 %v802, %v916
        %v949 = vadd.f32 %v803, %v917
        %v950 = vadd.f32 %v804, %v918
        %v951 = vadd.f32 %v805, %v919
        %v952 = vadd.f32 %v806, %v920
        %v953 = vadd.f32 %v807, %v921
        %v954 = vadd.f32 %v808, %v922
        %v955 = vadd.f32 %v809, %v923
        %v956 = vadd.f32 %v810, %v924
        %v957 = vadd.f32 %v811, %v925
        %v958 = vadd.f32 %v812, %v926
        %v959 = vadd.f32 %v813, %v927
        %v960 = vadd.f32 %v814, %v928
        %v961 = vadd.f32 %v815, %v929
        %v962 = vadd.f32 %v816, %v930
        %v963 = vadd.f32 %v817, %v931
        %v964 = vadd.f32 %v818, %v932
        %v965 = vadd.f32 %v819, %v933
        %v966 = vadd.f32 %v820, %v934
        %v967 = vadd.f32 %v821, %v935
        %v968 = vadd.f32 %v822, %v936
        %v969 = vmax.f32 %v937, 0.0
        %v970 = vmax.f32 %v938, 0.0
        %v971 = vmax.f32 %v939, 0.0
        %v972 = vmax.f32 %v940, 0.0
        %v973 = vmax.f32 %v941, 0.0
        %v974 = vmax.f32 %v942, 0.0
        %v975 = vmax.f32 %v943, 0.0
        %v976 = vmax.f32 %v944, 0.0
        %v977 = vmax.f32 %v945, 0.0
        %v978 = vmax.f32 %v946, 0.0
        %v979 = vmax.f32 %v947, 0.0
        %v980 = vmax.f32 %v948, 0.0
        %v981 = vmax.f32 %v949, 0.0
        %v982 = vmax.f32 %v950, 0.0
        %v983 = vmax.f32 %v951, 0.0
        %v984 = vmax.f32 %v952, 0.0
        %v985 = vmax.f32 %v953, 0.0
        %v986 = vmax.f32 %v954, 0.0
        %v987 = vmax.f32 %v955, 0.0
        %v988 = vmax.f32 %v956, 0.0
        %v989 = vmax.f32 %v957, 0.0
        %v990 = vmax.f32 %v958, 0.0
        %v991 = vmax.f32 %v959, 0.0
        %v992 = vmax.f32 %v960, 0.0
        %v993 = vmax.f32 %v961, 0.0
        %v994 = vmax.f32 %v962, 0.0
        %v995 = vmax.f32 %v963, 0.0
        %v996 = vmax.f32 %v964, 0.0
        %v997 = vmax.f32 %v965, 0.0
        %v998 = vmax.f32 %v966, 0.0
        %v999 = vmax.f32 %v967, 0.0
        %v1000 = vmax.f32 %v968, 0.0
        %v1001 = vld [vmem:[%s3] sm:$0xf]
        %v1002 = vpack.c.bf16 %v971, %v969
        %v1003 = vpack.c.bf16 %v972, %v970
        %v1004 = vpack.c.bf16 %v975, %v973
        %v1005 = vpack.c.bf16 %v976, %v974
        %v1006 = vpack.c.bf16 %v979, %v977
        %v1007 = vpack.c.bf16 %v980, %v978
        %v1008 = vpack.c.bf16 %v983, %v981
        %v1009 = vpack.c.bf16 %v984, %v982
        %v1010 = vpack.c.bf16 %v987, %v985
        %v1011 = vpack.c.bf16 %v988, %v986
        %v1012 = vpack.c.bf16 %v991, %v989
        %v1013 = vpack.c.bf16 %v992, %v990
        %v1014 = vpack.c.bf16 %v995, %v993
        %v1015 = vpack.c.bf16 %v996, %v994
        %v1016 = vpack.c.bf16 %v999, %v997
        %v1017 = vpack.c.bf16 %v1000, %v998
        %v1018 = vld [vmem:[%s1 + $0x80] sm:$0xff]
        %v1019 = vld [vmem:[%s1 + $0x88] sm:$0xff]
        %v1020 = vld [vmem:[%s1 + $0x90] sm:$0xff]
        %v1021 = vld [vmem:[%s1 + $0x98] sm:$0xff]
        %v1022 = vld [vmem:[%s1 + $0xa0] sm:$0xff]
        %v1023 = vld [vmem:[%s1 + $0xa8] sm:$0xff]
        %v1024 = vld [vmem:[%s1 + $0xb0] sm:$0xff]
        %v1025 = vld [vmem:[%s1 + $0xb8] sm:$0xff]
        %v1026 = vld [vmem:[%s1 + $0xc0] sm:$0xff]
        %v1027 = vld [vmem:[%s1 + $0xc8] sm:$0xff]
        %v1028 = vld [vmem:[%s1 + $0xd0] sm:$0xff]
        %v1029 = vld [vmem:[%s1 + $0xd8] sm:$0xff]
        %v1030 = vld [vmem:[%s1 + $0xe0] sm:$0xff]
        %v1031 = vld [vmem:[%s1 + $0xe8] sm:$0xff]
        %v1032 = vld [vmem:[%s1 + $0xf0] sm:$0xff]
        %v1033 = vld [vmem:[%s1 + $0xf8] sm:$0xff]
        %v1034 = vld [vmem:[%s2 + $0x80] sm:$0xff]
        %v1035 = vld [vmem:[%s2 + $0x88] sm:$0xff]
        %v1036 = vld [vmem:[%s2 + $0x90] sm:$0xff]
        %v1037 = vld [vmem:[%s2 + $0x98] sm:$0xff]
        %v1038 = vld [vmem:[%s2 + $0xa0] sm:$0xff]
        %v1039 = vld [vmem:[%s2 + $0xa8] sm:$0xff]
        %v1040 = vld [vmem:[%s2 + $0xb0] sm:$0xff]
        %v1041 = vld [vmem:[%s2 + $0xb8] sm:$0xff]
        %v1042 = vld [vmem:[%s2 + $0xc0] sm:$0xff]
        %v1043 = vld [vmem:[%s2 + $0xc8] sm:$0xff]
        %v1044 = vld [vmem:[%s2 + $0xd0] sm:$0xff]
        %v1045 = vld [vmem:[%s2 + $0xd8] sm:$0xff]
        %v1046 = vld [vmem:[%s2 + $0xe0] sm:$0xff]
        %v1047 = vld [vmem:[%s2 + $0xe8] sm:$0xff]
        %v1048 = vld [vmem:[%s2 + $0xf0] sm:$0xff]
        %v1049 = vld [vmem:[%s2 + $0xf8] sm:$0xff]
        %1051 = vset.pattern.permute.xlu0 0
        %1052 = vperm.xlu0 %1051, %v1018
        %v1053 = vpop.permute.xlu0 %1052
        %1056 = vset.pattern.permute.xlu0 0
        %1057 = vperm.xlu0 %1056, %v1019
        %v1058 = vpop.permute.xlu0 %1057
        %1061 = vset.pattern.permute.xlu0 0
        %1062 = vperm.xlu0 %1061, %v1020
        %v1063 = vpop.permute.xlu0 %1062
        %1066 = vset.pattern.permute.xlu0 0
        %1067 = vperm.xlu0 %1066, %v1021
        %v1068 = vpop.permute.xlu0 %1067
        %1071 = vset.pattern.permute.xlu0 0
        %1072 = vperm.xlu0 %1071, %v1022
        %v1073 = vpop.permute.xlu0 %1072
        %1076 = vset.pattern.permute.xlu0 0
        %1077 = vperm.xlu0 %1076, %v1023
        %v1078 = vpop.permute.xlu0 %1077
        %1081 = vset.pattern.permute.xlu0 0
        %1082 = vperm.xlu0 %1081, %v1024
        %v1083 = vpop.permute.xlu0 %1082
        %1086 = vset.pattern.permute.xlu0 0
        %1087 = vperm.xlu0 %1086, %v1025
        %v1088 = vpop.permute.xlu0 %1087
        %1091 = vset.pattern.permute.xlu0 0
        %1092 = vperm.xlu0 %1091, %v1026
        %v1093 = vpop.permute.xlu0 %1092
        %1096 = vset.pattern.permute.xlu0 0
        %1097 = vperm.xlu0 %1096, %v1027
        %v1098 = vpop.permute.xlu0 %1097
        %1101 = vset.pattern.permute.xlu0 0
        %1102 = vperm.xlu0 %1101, %v1028
        %v1103 = vpop.permute.xlu0 %1102
        %1106 = vset.pattern.permute.xlu0 0
        %1107 = vperm.xlu0 %1106, %v1029
        %v1108 = vpop.permute.xlu0 %1107
        %1111 = vset.pattern.permute.xlu0 0
        %1112 = vperm.xlu0 %1111, %v1030
        %v1113 = vpop.permute.xlu0 %1112
        %1116 = vset.pattern.permute.xlu0 0
        %1117 = vperm.xlu0 %1116, %v1031
        %v1118 = vpop.permute.xlu0 %1117
        %1121 = vset.pattern.permute.xlu0 0
        %1122 = vperm.xlu0 %1121, %v1032
        %v1123 = vpop.permute.xlu0 %1122
        %1126 = vset.pattern.permute.xlu0 0
        %1127 = vperm.xlu0 %1126, %v1033
        %v1128 = vpop.permute.xlu0 %1127
        %v1130 = vmul.f32 %v1053, %v382
        %v1131 = vmul.f32 %v1053, %v386
        %v1132 = vmul.f32 %v1058, %v382
        %v1133 = vmul.f32 %v1058, %v386
        %v1134 = vmul.f32 %v1063, %v382
        %v1135 = vmul.f32 %v1063, %v386
        %v1136 = vmul.f32 %v1068, %v382
        %v1137 = vmul.f32 %v1068, %v386
        %v1138 = vmul.f32 %v1073, %v382
        %v1139 = vmul.f32 %v1073, %v386
        %v1140 = vmul.f32 %v1078, %v382
        %v1141 = vmul.f32 %v1078, %v386
        %v1142 = vmul.f32 %v1083, %v382
        %v1143 = vmul.f32 %v1083, %v386
        %v1144 = vmul.f32 %v1088, %v382
        %v1145 = vmul.f32 %v1088, %v386
        %v1146 = vmul.f32 %v1093, %v382
        %v1147 = vmul.f32 %v1093, %v386
        %v1148 = vmul.f32 %v1098, %v382
        %v1149 = vmul.f32 %v1098, %v386
        %v1150 = vmul.f32 %v1103, %v382
        %v1151 = vmul.f32 %v1103, %v386
        %v1152 = vmul.f32 %v1108, %v382
        %v1153 = vmul.f32 %v1108, %v386
        %v1154 = vmul.f32 %v1113, %v382
        %v1155 = vmul.f32 %v1113, %v386
        %v1156 = vmul.f32 %v1118, %v382
        %v1157 = vmul.f32 %v1118, %v386
        %v1158 = vmul.f32 %v1123, %v382
        %v1159 = vmul.f32 %v1123, %v386
        %v1160 = vmul.f32 %v1128, %v382
        %v1161 = vmul.f32 %v1128, %v386
        %1163 = vset.pattern.permute.xlu0 0
        %1164 = vperm.xlu0 %1163, %v1034
        %v1165 = vpop.permute.xlu0 %1164
        %1168 = vset.pattern.permute.xlu0 0
        %1169 = vperm.xlu0 %1168, %v1035
        %v1170 = vpop.permute.xlu0 %1169
        %1173 = vset.pattern.permute.xlu0 0
        %1174 = vperm.xlu0 %1173, %v1036
        %v1175 = vpop.permute.xlu0 %1174
        %1178 = vset.pattern.permute.xlu0 0
        %1179 = vperm.xlu0 %1178, %v1037
        %v1180 = vpop.permute.xlu0 %1179
        %1183 = vset.pattern.permute.xlu0 0
        %1184 = vperm.xlu0 %1183, %v1038
        %v1185 = vpop.permute.xlu0 %1184
        %1188 = vset.pattern.permute.xlu0 0
        %1189 = vperm.xlu0 %1188, %v1039
        %v1190 = vpop.permute.xlu0 %1189
        %1193 = vset.pattern.permute.xlu0 0
        %1194 = vperm.xlu0 %1193, %v1040
        %v1195 = vpop.permute.xlu0 %1194
        %1198 = vset.pattern.permute.xlu0 0
        %1199 = vperm.xlu0 %1198, %v1041
        %v1200 = vpop.permute.xlu0 %1199
        %1203 = vset.pattern.permute.xlu0 0
        %1204 = vperm.xlu0 %1203, %v1042
        %v1205 = vpop.permute.xlu0 %1204
        %1208 = vset.pattern.permute.xlu0 0
        %1209 = vperm.xlu0 %1208, %v1043
        %v1210 = vpop.permute.xlu0 %1209
        %1213 = vset.pattern.permute.xlu0 0
        %1214 = vperm.xlu0 %1213, %v1044
        %v1215 = vpop.permute.xlu0 %1214
        %1218 = vset.pattern.permute.xlu0 0
        %1219 = vperm.xlu0 %1218, %v1045
        %v1220 = vpop.permute.xlu0 %1219
        %1223 = vset.pattern.permute.xlu0 0
        %1224 = vperm.xlu0 %1223, %v1046
        %v1225 = vpop.permute.xlu0 %1224
        %1228 = vset.pattern.permute.xlu0 0
        %1229 = vperm.xlu0 %1228, %v1047
        %v1230 = vpop.permute.xlu0 %1229
        %1233 = vset.pattern.permute.xlu0 0
        %1234 = vperm.xlu0 %1233, %v1048
        %v1235 = vpop.permute.xlu0 %1234
        %1238 = vset.pattern.permute.xlu0 0
        %1239 = vperm.xlu0 %1238, %v1049
        %v1240 = vpop.permute.xlu0 %1239
        %v1242 = vadd.f32 %v1165, %v1130
        %v1243 = vadd.f32 %v1165, %v1131
        %v1244 = vadd.f32 %v1170, %v1132
        %v1245 = vadd.f32 %v1170, %v1133
        %v1246 = vadd.f32 %v1175, %v1134
        %v1247 = vadd.f32 %v1175, %v1135
        %v1248 = vadd.f32 %v1180, %v1136
        %v1249 = vadd.f32 %v1180, %v1137
        %v1250 = vadd.f32 %v1185, %v1138
        %v1251 = vadd.f32 %v1185, %v1139
        %v1252 = vadd.f32 %v1190, %v1140
        %v1253 = vadd.f32 %v1190, %v1141
        %v1254 = vadd.f32 %v1195, %v1142
        %v1255 = vadd.f32 %v1195, %v1143
        %v1256 = vadd.f32 %v1200, %v1144
        %v1257 = vadd.f32 %v1200, %v1145
        %v1258 = vadd.f32 %v1205, %v1146
        %v1259 = vadd.f32 %v1205, %v1147
        %v1260 = vadd.f32 %v1210, %v1148
        %v1261 = vadd.f32 %v1210, %v1149
        %v1262 = vadd.f32 %v1215, %v1150
        %v1263 = vadd.f32 %v1215, %v1151
        %v1264 = vadd.f32 %v1220, %v1152
        %v1265 = vadd.f32 %v1220, %v1153
        %v1266 = vadd.f32 %v1225, %v1154
        %v1267 = vadd.f32 %v1225, %v1155
        %v1268 = vadd.f32 %v1230, %v1156
        %v1269 = vadd.f32 %v1230, %v1157
        %v1270 = vadd.f32 %v1235, %v1158
        %v1271 = vadd.f32 %v1235, %v1159
        %v1272 = vadd.f32 %v1240, %v1160
        %v1273 = vadd.f32 %v1240, %v1161
        %1274 = vset.pattern.permute.xlu0 1
        %1275 = vperm.xlu0 %1274, %v1018
        %v1276 = vpop.permute.xlu0 %1275
        %1278 = vset.pattern.permute.xlu0 1
        %1279 = vperm.xlu0 %1278, %v1019
        %v1280 = vpop.permute.xlu0 %1279
        %1282 = vset.pattern.permute.xlu0 1
        %1283 = vperm.xlu0 %1282, %v1020
        %v1284 = vpop.permute.xlu0 %1283
        %1286 = vset.pattern.permute.xlu0 1
        %1287 = vperm.xlu0 %1286, %v1021
        %v1288 = vpop.permute.xlu0 %1287
        %1290 = vset.pattern.permute.xlu0 1
        %1291 = vperm.xlu0 %1290, %v1022
        %v1292 = vpop.permute.xlu0 %1291
        %1294 = vset.pattern.permute.xlu0 1
        %1295 = vperm.xlu0 %1294, %v1023
        %v1296 = vpop.permute.xlu0 %1295
        %1298 = vset.pattern.permute.xlu0 1
        %1299 = vperm.xlu0 %1298, %v1024
        %v1300 = vpop.permute.xlu0 %1299
        %1302 = vset.pattern.permute.xlu0 1
        %1303 = vperm.xlu0 %1302, %v1025
        %v1304 = vpop.permute.xlu0 %1303
        %1306 = vset.pattern.permute.xlu0 1
        %1307 = vperm.xlu0 %1306, %v1026
        %v1308 = vpop.permute.xlu0 %1307
        %1310 = vset.pattern.permute.xlu0 1
        %1311 = vperm.xlu0 %1310, %v1027
        %v1312 = vpop.permute.xlu0 %1311
        %1314 = vset.pattern.permute.xlu0 1
        %1315 = vperm.xlu0 %1314, %v1028
        %v1316 = vpop.permute.xlu0 %1315
        %1318 = vset.pattern.permute.xlu0 1
        %1319 = vperm.xlu0 %1318, %v1029
        %v1320 = vpop.permute.xlu0 %1319
        %1322 = vset.pattern.permute.xlu0 1
        %1323 = vperm.xlu0 %1322, %v1030
        %v1324 = vpop.permute.xlu0 %1323
        %1326 = vset.pattern.permute.xlu0 1
        %1327 = vperm.xlu0 %1326, %v1031
        %v1328 = vpop.permute.xlu0 %1327
        %1330 = vset.pattern.permute.xlu0 1
        %1331 = vperm.xlu0 %1330, %v1032
        %v1332 = vpop.permute.xlu0 %1331
        %1334 = vset.pattern.permute.xlu0 1
        %1335 = vperm.xlu0 %1334, %v1033
        %v1336 = vpop.permute.xlu0 %1335
        %v1338 = vmul.f32 %v1276, %v608
        %v1339 = vmul.f32 %v1276, %v612
        %v1340 = vmul.f32 %v1280, %v608
        %v1341 = vmul.f32 %v1280, %v612
        %v1342 = vmul.f32 %v1284, %v608
        %v1343 = vmul.f32 %v1284, %v612
        %v1344 = vmul.f32 %v1288, %v608
        %v1345 = vmul.f32 %v1288, %v612
        %v1346 = vmul.f32 %v1292, %v608
        %v1347 = vmul.f32 %v1292, %v612
        %v1348 = vmul.f32 %v1296, %v608
        %v1349 = vmul.f32 %v1296, %v612
        %v1350 = vmul.f32 %v1300, %v608
        %v1351 = vmul.f32 %v1300, %v612
        %v1352 = vmul.f32 %v1304, %v608
        %v1353 = vmul.f32 %v1304, %v612
        %v1354 = vmul.f32 %v1308, %v608
        %v1355 = vmul.f32 %v1308, %v612
        %v1356 = vmul.f32 %v1312, %v608
        %v1357 = vmul.f32 %v1312, %v612
        %v1358 = vmul.f32 %v1316, %v608
        %v1359 = vmul.f32 %v1316, %v612
        %v1360 = vmul.f32 %v1320, %v608
        %v1361 = vmul.f32 %v1320, %v612
        %v1362 = vmul.f32 %v1324, %v608
        %v1363 = vmul.f32 %v1324, %v612
        %v1364 = vmul.f32 %v1328, %v608
        %v1365 = vmul.f32 %v1328, %v612
        %v1366 = vmul.f32 %v1332, %v608
        %v1367 = vmul.f32 %v1332, %v612
        %v1368 = vmul.f32 %v1336, %v608
        %v1369 = vmul.f32 %v1336, %v612
        %v1370 = vadd.f32 %v1242, %v1338
        %v1371 = vadd.f32 %v1243, %v1339
        %v1372 = vadd.f32 %v1244, %v1340
        %v1373 = vadd.f32 %v1245, %v1341
        %v1374 = vadd.f32 %v1246, %v1342
        %v1375 = vadd.f32 %v1247, %v1343
        %v1376 = vadd.f32 %v1248, %v1344
        %v1377 = vadd.f32 %v1249, %v1345
        %v1378 = vadd.f32 %v1250, %v1346
        %v1379 = vadd.f32 %v1251, %v1347
        %v1380 = vadd.f32 %v1252, %v1348
        %v1381 = vadd.f32 %v1253, %v1349
        %v1382 = vadd.f32 %v1254, %v1350
        %v1383 = vadd.f32 %v1255, %v1351
        %v1384 = vadd.f32 %v1256, %v1352
        %v1385 = vadd.f32 %v1257, %v1353
        %v1386 = vadd.f32 %v1258, %v1354
        %v1387 = vadd.f32 %v1259, %v1355
        %v1388 = vadd.f32 %v1260, %v1356
        %v1389 = vadd.f32 %v1261, %v1357
        %v1390 = vadd.f32 %v1262, %v1358
        %v1391 = vadd.f32 %v1263, %v1359
        %v1392 = vadd.f32 %v1264, %v1360
        %v1393 = vadd.f32 %v1265, %v1361
        %v1394 = vadd.f32 %v1266, %v1362
        %v1395 = vadd.f32 %v1267, %v1363
        %v1396 = vadd.f32 %v1268, %v1364
        %v1397 = vadd.f32 %v1269, %v1365
        %v1398 = vadd.f32 %v1270, %v1366
        %v1399 = vadd.f32 %v1271, %v1367
        %v1400 = vadd.f32 %v1272, %v1368
        %v1401 = vadd.f32 %v1273, %v1369
        %1402 = vset.pattern.permute.xlu0 2
        %1403 = vperm.xlu0 %1402, %v1018
        %v1404 = vpop.permute.xlu0 %1403
        %1406 = vset.pattern.permute.xlu0 2
        %1407 = vperm.xlu0 %1406, %v1019
        %v1408 = vpop.permute.xlu0 %1407
        %1410 = vset.pattern.permute.xlu0 2
        %1411 = vperm.xlu0 %1410, %v1020
        %v1412 = vpop.permute.xlu0 %1411
        %1414 = vset.pattern.permute.xlu0 2
        %1415 = vperm.xlu0 %1414, %v1021
        %v1416 = vpop.permute.xlu0 %1415
        %1418 = vset.pattern.permute.xlu0 2
        %1419 = vperm.xlu0 %1418, %v1022
        %v1420 = vpop.permute.xlu0 %1419
        %1422 = vset.pattern.permute.xlu0 2
        %1423 = vperm.xlu0 %1422, %v1023
        %v1424 = vpop.permute.xlu0 %1423
        %1426 = vset.pattern.permute.xlu0 2
        %1427 = vperm.xlu0 %1426, %v1024
        %v1428 = vpop.permute.xlu0 %1427
        %1430 = vset.pattern.permute.xlu0 2
        %1431 = vperm.xlu0 %1430, %v1025
        %v1432 = vpop.permute.xlu0 %1431
        %1434 = vset.pattern.permute.xlu0 2
        %1435 = vperm.xlu0 %1434, %v1026
        %v1436 = vpop.permute.xlu0 %1435
        %1438 = vset.pattern.permute.xlu0 2
        %1439 = vperm.xlu0 %1438, %v1027
        %v1440 = vpop.permute.xlu0 %1439
        %1442 = vset.pattern.permute.xlu0 2
        %1443 = vperm.xlu0 %1442, %v1028
        %v1444 = vpop.permute.xlu0 %1443
        %1446 = vset.pattern.permute.xlu0 2
        %1447 = vperm.xlu0 %1446, %v1029
        %v1448 = vpop.permute.xlu0 %1447
        %1450 = vset.pattern.permute.xlu0 2
        %1451 = vperm.xlu0 %1450, %v1030
        %v1452 = vpop.permute.xlu0 %1451
        %1454 = vset.pattern.permute.xlu0 2
        %1455 = vperm.xlu0 %1454, %v1031
        %v1456 = vpop.permute.xlu0 %1455
        %1458 = vset.pattern.permute.xlu0 2
        %1459 = vperm.xlu0 %1458, %v1032
        %v1460 = vpop.permute.xlu0 %1459
        %1462 = vset.pattern.permute.xlu0 2
        %1463 = vperm.xlu0 %1462, %v1033
        %v1464 = vpop.permute.xlu0 %1463
        %v1466 = vmul.f32 %v1404, %v754
        %v1467 = vmul.f32 %v1404, %v758
        %v1468 = vmul.f32 %v1408, %v754
        %v1469 = vmul.f32 %v1408, %v758
        %v1470 = vmul.f32 %v1412, %v754
        %v1471 = vmul.f32 %v1412, %v758
        %v1472 = vmul.f32 %v1416, %v754
        %v1473 = vmul.f32 %v1416, %v758
        %v1474 = vmul.f32 %v1420, %v754
        %v1475 = vmul.f32 %v1420, %v758
        %v1476 = vmul.f32 %v1424, %v754
        %v1477 = vmul.f32 %v1424, %v758
        %v1478 = vmul.f32 %v1428, %v754
        %v1479 = vmul.f32 %v1428, %v758
        %v1480 = vmul.f32 %v1432, %v754
        %v1481 = vmul.f32 %v1432, %v758
        %v1482 = vmul.f32 %v1436, %v754
        %v1483 = vmul.f32 %v1436, %v758
        %v1484 = vmul.f32 %v1440, %v754
        %v1485 = vmul.f32 %v1440, %v758
        %v1486 = vmul.f32 %v1444, %v754
        %v1487 = vmul.f32 %v1444, %v758
        %v1488 = vmul.f32 %v1448, %v754
        %v1489 = vmul.f32 %v1448, %v758
        %v1490 = vmul.f32 %v1452, %v754
        %v1491 = vmul.f32 %v1452, %v758
        %v1492 = vmul.f32 %v1456, %v754
        %v1493 = vmul.f32 %v1456, %v758
        %v1494 = vmul.f32 %v1460, %v754
        %v1495 = vmul.f32 %v1460, %v758
        %v1496 = vmul.f32 %v1464, %v754
        %v1497 = vmul.f32 %v1464, %v758
        %v1498 = vadd.f32 %v1370, %v1466
        %v1499 = vadd.f32 %v1371, %v1467
        %v1500 = vadd.f32 %v1372, %v1468
        %v1501 = vadd.f32 %v1373, %v1469
        %v1502 = vadd.f32 %v1374, %v1470
        %v1503 = vadd.f32 %v1375, %v1471
        %v1504 = vadd.f32 %v1376, %v1472
        %v1505 = vadd.f32 %v1377, %v1473
        %v1506 = vadd.f32 %v1378, %v1474
        %v1507 = vadd.f32 %v1379, %v1475
        %v1508 = vadd.f32 %v1380, %v1476
        %v1509 = vadd.f32 %v1381, %v1477
        %v1510 = vadd.f32 %v1382, %v1478
        %v1511 = vadd.f32 %v1383, %v1479
        %v1512 = vadd.f32 %v1384, %v1480
        %v1513 = vadd.f32 %v1385, %v1481
        %v1514 = vadd.f32 %v1386, %v1482
        %v1515 = vadd.f32 %v1387, %v1483
        %v1516 = vadd.f32 %v1388, %v1484
        %v1517 = vadd.f32 %v1389, %v1485
        %v1518 = vadd.f32 %v1390, %v1486
        %v1519 = vadd.f32 %v1391, %v1487
        %v1520 = vadd.f32 %v1392, %v1488
        %v1521 = vadd.f32 %v1393, %v1489
        %v1522 = vadd.f32 %v1394, %v1490
        %v1523 = vadd.f32 %v1395, %v1491
        %v1524 = vadd.f32 %v1396, %v1492
        %v1525 = vadd.f32 %v1397, %v1493
        %v1526 = vadd.f32 %v1398, %v1494
        %v1527 = vadd.f32 %v1399, %v1495
        %v1528 = vadd.f32 %v1400, %v1496
        %v1529 = vadd.f32 %v1401, %v1497
        %1530 = vset.pattern.permute.xlu0 3
        %1531 = vperm.xlu0 %1530, %v1018
        %v1532 = vpop.permute.xlu0 %1531
        %1534 = vset.pattern.permute.xlu0 3
        %1535 = vperm.xlu0 %1534, %v1019
        %v1536 = vpop.permute.xlu0 %1535
        %1538 = vset.pattern.permute.xlu0 3
        %1539 = vperm.xlu0 %1538, %v1020
        %v1540 = vpop.permute.xlu0 %1539
        %1542 = vset.pattern.permute.xlu0 3
        %1543 = vperm.xlu0 %1542, %v1021
        %v1544 = vpop.permute.xlu0 %1543
        %1546 = vset.pattern.permute.xlu0 3
        %1547 = vperm.xlu0 %1546, %v1022
        %v1548 = vpop.permute.xlu0 %1547
        %1550 = vset.pattern.permute.xlu0 3
        %1551 = vperm.xlu0 %1550, %v1023
        %v1552 = vpop.permute.xlu0 %1551
        %1554 = vset.pattern.permute.xlu0 3
        %1555 = vperm.xlu0 %1554, %v1024
        %v1556 = vpop.permute.xlu0 %1555
        %1558 = vset.pattern.permute.xlu0 3
        %1559 = vperm.xlu0 %1558, %v1025
        %v1560 = vpop.permute.xlu0 %1559
        %1562 = vset.pattern.permute.xlu0 3
        %1563 = vperm.xlu0 %1562, %v1026
        %v1564 = vpop.permute.xlu0 %1563
        %1566 = vset.pattern.permute.xlu0 3
        %1567 = vperm.xlu0 %1566, %v1027
        %v1568 = vpop.permute.xlu0 %1567
        %1570 = vset.pattern.permute.xlu0 3
        %1571 = vperm.xlu0 %1570, %v1028
        %v1572 = vpop.permute.xlu0 %1571
        %1574 = vset.pattern.permute.xlu0 3
        %1575 = vperm.xlu0 %1574, %v1029
        %v1576 = vpop.permute.xlu0 %1575
        %1578 = vset.pattern.permute.xlu0 3
        %1579 = vperm.xlu0 %1578, %v1030
        %v1580 = vpop.permute.xlu0 %1579
        %1582 = vset.pattern.permute.xlu0 3
        %1583 = vperm.xlu0 %1582, %v1031
        %v1584 = vpop.permute.xlu0 %1583
        %1586 = vset.pattern.permute.xlu0 3
        %1587 = vperm.xlu0 %1586, %v1032
        %v1588 = vpop.permute.xlu0 %1587
        %1590 = vset.pattern.permute.xlu0 3
        %1591 = vperm.xlu0 %1590, %v1033
        %v1592 = vpop.permute.xlu0 %1591
        %v1594 = vmul.f32 %v1532, %v900
        %v1595 = vmul.f32 %v1532, %v904
        %v1596 = vmul.f32 %v1536, %v900
        %v1597 = vmul.f32 %v1536, %v904
        %v1598 = vmul.f32 %v1540, %v900
        %v1599 = vmul.f32 %v1540, %v904
        %v1600 = vmul.f32 %v1544, %v900
        %v1601 = vmul.f32 %v1544, %v904
        %v1602 = vmul.f32 %v1548, %v900
        %v1603 = vmul.f32 %v1548, %v904
        %v1604 = vmul.f32 %v1552, %v900
        %v1605 = vmul.f32 %v1552, %v904
        %v1606 = vmul.f32 %v1556, %v900
        %v1607 = vmul.f32 %v1556, %v904
        %v1608 = vmul.f32 %v1560, %v900
        %v1609 = vmul.f32 %v1560, %v904
        %v1610 = vmul.f32 %v1564, %v900
        %v1611 = vmul.f32 %v1564, %v904
        %v1612 = vmul.f32 %v1568, %v900
        %v1613 = vmul.f32 %v1568, %v904
        %v1614 = vmul.f32 %v1572, %v900
        %v1615 = vmul.f32 %v1572, %v904
        %v1616 = vmul.f32 %v1576, %v900
        %v1617 = vmul.f32 %v1576, %v904
        %v1618 = vmul.f32 %v1580, %v900
        %v1619 = vmul.f32 %v1580, %v904
        %v1620 = vmul.f32 %v1584, %v900
        %v1621 = vmul.f32 %v1584, %v904
        %v1622 = vmul.f32 %v1588, %v900
        %v1623 = vmul.f32 %v1588, %v904
        %v1624 = vmul.f32 %v1592, %v900
        %v1625 = vmul.f32 %v1592, %v904
        %v1626 = vadd.f32 %v1498, %v1594
        %v1627 = vadd.f32 %v1499, %v1595
        %v1628 = vadd.f32 %v1500, %v1596
        %v1629 = vadd.f32 %v1501, %v1597
        %v1630 = vadd.f32 %v1502, %v1598
        %v1631 = vadd.f32 %v1503, %v1599
        %v1632 = vadd.f32 %v1504, %v1600
        %v1633 = vadd.f32 %v1505, %v1601
        %v1634 = vadd.f32 %v1506, %v1602
        %v1635 = vadd.f32 %v1507, %v1603
        %v1636 = vadd.f32 %v1508, %v1604
        %v1637 = vadd.f32 %v1509, %v1605
        %v1638 = vadd.f32 %v1510, %v1606
        %v1639 = vadd.f32 %v1511, %v1607
        %v1640 = vadd.f32 %v1512, %v1608
        %v1641 = vadd.f32 %v1513, %v1609
        %v1642 = vadd.f32 %v1514, %v1610
        %v1643 = vadd.f32 %v1515, %v1611
        %v1644 = vadd.f32 %v1516, %v1612
        %v1645 = vadd.f32 %v1517, %v1613
        %v1646 = vadd.f32 %v1518, %v1614
        %v1647 = vadd.f32 %v1519, %v1615
        %v1648 = vadd.f32 %v1520, %v1616
        %v1649 = vadd.f32 %v1521, %v1617
        %v1650 = vadd.f32 %v1522, %v1618
        %v1651 = vadd.f32 %v1523, %v1619
        %v1652 = vadd.f32 %v1524, %v1620
        %v1653 = vadd.f32 %v1525, %v1621
        %v1654 = vadd.f32 %v1526, %v1622
        %v1655 = vadd.f32 %v1527, %v1623
        %v1656 = vadd.f32 %v1528, %v1624
        %v1657 = vadd.f32 %v1529, %v1625
        %v1658 = vmax.f32 %v1626, 0.0
        %v1659 = vmax.f32 %v1627, 0.0
        %v1660 = vmax.f32 %v1628, 0.0
        %v1661 = vmax.f32 %v1629, 0.0
        %v1662 = vmax.f32 %v1630, 0.0
        %v1663 = vmax.f32 %v1631, 0.0
        %v1664 = vmax.f32 %v1632, 0.0
        %v1665 = vmax.f32 %v1633, 0.0
        %v1666 = vmax.f32 %v1634, 0.0
        %v1667 = vmax.f32 %v1635, 0.0
        %v1668 = vmax.f32 %v1636, 0.0
        %v1669 = vmax.f32 %v1637, 0.0
        %v1670 = vmax.f32 %v1638, 0.0
        %v1671 = vmax.f32 %v1639, 0.0
        %v1672 = vmax.f32 %v1640, 0.0
        %v1673 = vmax.f32 %v1641, 0.0
        %v1674 = vmax.f32 %v1642, 0.0
        %v1675 = vmax.f32 %v1643, 0.0
        %v1676 = vmax.f32 %v1644, 0.0
        %v1677 = vmax.f32 %v1645, 0.0
        %v1678 = vmax.f32 %v1646, 0.0
        %v1679 = vmax.f32 %v1647, 0.0
        %v1680 = vmax.f32 %v1648, 0.0
        %v1681 = vmax.f32 %v1649, 0.0
        %v1682 = vmax.f32 %v1650, 0.0
        %v1683 = vmax.f32 %v1651, 0.0
        %v1684 = vmax.f32 %v1652, 0.0
        %v1685 = vmax.f32 %v1653, 0.0
        %v1686 = vmax.f32 %v1654, 0.0
        %v1687 = vmax.f32 %v1655, 0.0
        %v1688 = vmax.f32 %v1656, 0.0
        %v1689 = vmax.f32 %v1657, 0.0
        %v1690 = vld [vmem:[%s3 + $0x4] sm:$0xf]
        %v1691 = vpack.c.bf16 %v1660, %v1658
        %v1692 = vpack.c.bf16 %v1661, %v1659
        %v1693 = vpack.c.bf16 %v1664, %v1662
        %v1694 = vpack.c.bf16 %v1665, %v1663
        %v1695 = vpack.c.bf16 %v1668, %v1666
        %v1696 = vpack.c.bf16 %v1669, %v1667
        %v1697 = vpack.c.bf16 %v1672, %v1670
        %v1698 = vpack.c.bf16 %v1673, %v1671
        %v1699 = vpack.c.bf16 %v1676, %v1674
        %v1700 = vpack.c.bf16 %v1677, %v1675
        %v1701 = vpack.c.bf16 %v1680, %v1678
        %v1702 = vpack.c.bf16 %v1681, %v1679
        %v1703 = vpack.c.bf16 %v1684, %v1682
        %v1704 = vpack.c.bf16 %v1685, %v1683
        %v1705 = vpack.c.bf16 %v1688, %v1686
        %v1706 = vpack.c.bf16 %v1689, %v1687
        %1707 = vmatprep.subr.bf16.mxu0 %v1692
        %1708 = vmatpush1.bf16.msra.mxu0 %v1691
        %1709 = vmatprep.subr.bf16.mxu0 %v1694
        %1710 = vmatpush1.bf16.msra.mxu0 %v1693
        %1711 = vmatprep.subr.bf16.mxu0 %v1696
        %1712 = vmatpush1.bf16.msra.mxu0 %v1695
        %1713 = vmatprep.subr.bf16.mxu0 %v1698
        %1714 = vmatpush1.bf16.msra.mxu0 %v1697
        %1715 = vmatprep.subr.bf16.mxu0 %v1700
        %1716 = vmatpush1.bf16.msra.mxu0 %v1699
        %1717 = vmatprep.subr.bf16.mxu0 %v1702
        %1718 = vmatpush1.bf16.msra.mxu0 %v1701
        %1719 = vmatprep.subr.bf16.mxu0 %v1704
        %1720 = vmatpush1.bf16.msra.mxu0 %v1703
        %1721 = vmatprep.subr.bf16.mxu0 %v1706
        %1722 = vmatpush1.bf16.msra.mxu0 %v1705
        %1723 = vmatprep.subr.bf16.mxu0 0
        %1724 = vmatpush1.bf16.msra.mxu0 0
        %1725 = vmatprep.subr.bf16.mxu0 0
        %1726 = vmatpush1.bf16.msra.mxu0 0
        %1727 = vmatprep.subr.bf16.mxu0 0
        %1728 = vmatpush1.bf16.msra.mxu0 0
        %1729 = vmatprep.subr.bf16.mxu0 0
        %1730 = vmatpush1.bf16.msra.mxu0 0
        %1731 = vmatprep.subr.bf16.mxu0 0
        %1732 = vmatpush1.bf16.msra.mxu0 0
        %1733 = vmatprep.subr.bf16.mxu0 0
        %1734 = vmatpush1.bf16.msra.mxu0 0
        %1735 = vmatprep.subr.bf16.mxu0 0
        %1736 = vmatpush1.bf16.msra.mxu0 0
        %1737 = vmatprep.subr.bf16.mxu0 0
        %1738 = vmatpush1.bf16.msra.mxu0 0
        %1739 = vmatprep.mubr.bf16.mxu0 0
        %1740 = vmatmul.mubr.bf16.gmra.mrb[0].mxu0 %v1690
        %v1741 = vpop.f32.mrb[0].mxu0
        %v1742 = vadd.f32 0.0, %v1741
        %v1743 = vpop.f32.mrb[0].mxu0
        %v1744 = vadd.f32 0.0, %v1743
        %v1745 = vpop.f32.mrb[0].mxu0
        %v1746 = vpop.f32.mrb[0].mxu0
        %1747 = vdwg.mxu0
        %1748 = vmatprep.subr.bf16.mxu0 %v1003
        %1749 = vmatpush1.bf16.msra.mxu0 %v1002
        %1750 = vmatprep.subr.bf16.mxu0 %v1005
        %1751 = vmatpush1.bf16.msra.mxu0 %v1004
        %1752 = vmatprep.subr.bf16.mxu0 %v1007
        %1753 = vmatpush1.bf16.msra.mxu0 %v1006
        %1754 = vmatprep.subr.bf16.mxu0 %v1009
        %1755 = vmatpush1.bf16.msra.mxu0 %v1008
        %1756 = vmatprep.subr.bf16.mxu0 %v1011
        %1757 = vmatpush1.bf16.msra.mxu0 %v1010
        %1758 = vmatprep.subr.bf16.mxu0 %v1013
        %1759 = vmatpush1.bf16.msra.mxu0 %v1012
        %1760 = vmatprep.subr.bf16.mxu0 %v1015
        %1761 = vmatpush1.bf16.msra.mxu0 %v1014
        %1762 = vmatprep.subr.bf16.mxu0 %v1017
        %1763 = vmatpush1.bf16.msra.mxu0 %v1016
        %1764 = vmatprep.subr.bf16.mxu0 0
        %1765 = vmatpush1.bf16.msra.mxu0 0
        %1766 = vmatprep.subr.bf16.mxu0 0
        %1767 = vmatpush1.bf16.msra.mxu0 0
        %1768 = vmatprep.subr.bf16.mxu0 0
        %1769 = vmatpush1.bf16.msra.mxu0 0
        %1770 = vmatprep.subr.bf16.mxu0 0
        %1771 = vmatpush1.bf16.msra.mxu0 0
        %1772 = vmatprep.subr.bf16.mxu0 0
        %1773 = vmatpush1.bf16.msra.mxu0 0
        %1774 = vmatprep.subr.bf16.mxu0 0
        %1775 = vmatpush1.bf16.msra.mxu0 0
        %1776 = vmatprep.subr.bf16.mxu0 0
        %1777 = vmatpush1.bf16.msra.mxu0 0
        %1778 = vmatprep.subr.bf16.mxu0 0
        %1779 = vmatpush1.bf16.msra.mxu0 0
        %1780 = vmatprep.mubr.bf16.mxu0 0
        %1781 = vmatmul.mubr.bf16.gmra.mrb[0].mxu0 %v1001
        %v1782 = vpop.f32.mrb[0].mxu0
        %v1783 = vadd.f32 %v1742, %v1782
        %v1784 = vpop.f32.mrb[0].mxu0
        %v1785 = vadd.f32 %v1744, %v1784
        %v1786 = vpop.f32.mrb[0].mxu0
        %v1787 = vpop.f32.mrb[0].mxu0
        %1788 = vdwg.mxu0
        %v1789 = vld [vmem:[%s4] sm:$0xff]
        %1791 = vset.pattern.permute.xlu0 0
        %1792 = vperm.xlu0 %1791, %v1789
        %v1793 = vpop.permute.xlu0 %1792
        %v1795 = vadd.f32 %v1783, %v1793
        %v1796 = vadd.f32 %v1785, %v1793
        %1797 = vst [vmem:[%s242] sm:$0xff] %v1795
        %1798 = vst [vmem:[%s242 + $0x8] sm:$0xff] %v1796
        %s1799 = sand.u32 %s153, 1
        %s1800 = scalar_lea.sflag [#allocation3], %s1799
        %s1801 = sand.u32 %s153, 1
        %s1802 = smul.addr %s1801, 16
        %s1803 = scalar_lea.vmem [#allocation2], %s1802
        // Predicated region
        $region41: #{tpu_custom_call.1} parent=39 // pred_check
          %p1804 = pneg %p163
        $region42: #{tpu_custom_call.1} parent=39 // pred_check_branch
          %1806 = sbr.rel (%p1804) target = $region44
        $region43: #{tpu_custom_call.1} parent=39 // pred_region
          %s1807 = smul.u32 2, %s24
          %s1809 = ssub.s32 256, 256
          %1810 = vsyncadd %s1800, %s1809
          %s1811 = smul.addr %s23, 2
          %s1812 = sadd.s32 %s1807, %s1811
          %s1813 = smul.addr %s1812, 128
          %s1814 = scalar_lea.hbm %s5, %s1813
          %s1816 = sshll.u32 %s1803, 4
          %s1817 = int_to_ptr.vmem [resolvable:$true] %s1816
          %1819 = dma.vmem_to_hbm [thread:$0]  %s1817, 256, %s1814, %s1800
        $region44: #{tpu_custom_call.1} parent=39 // pred_fallthru
          _
      $region40: #{tpu_custom_call.1} parent=5 // pred_fallthru
        _
      %p1820 = scmp.le.s32.totalorder 2, %s14
      // Predicated region
      $region45: #{tpu_custom_call.1} parent=5 // pred_check
        %p1821 = pneg %p1820
      $region46: #{tpu_custom_call.1} parent=5 // pred_check_branch
        %1823 = sbr.rel (%p1821) target = $region48
      $region47: #{tpu_custom_call.1} parent=5 // pred_region
        %s1824 = ssub.s32 %s14, 2
        // Predicated region
        $region49: #{tpu_custom_call.1} parent=47 // pred_check
          %p1825 = pneg %p169
        $region50: #{tpu_custom_call.1} parent=47 // pred_check_branch
          %1827 = sbr.rel (%p1825) target = $region52
        $region51: #{tpu_custom_call.1} parent=47 // pred_region
          %s1828 = sand.u32 %s154, 1
          %s1829 = scalar_lea.sflag [#allocation3], %s1828
          %s1830 = sand.u32 %s154, 1
          %s1831 = smul.addr %s1830, 16
          %s1832 = scalar_lea.vmem [#allocation2], %s1831
          %1833 = dma.done %s1829, 256
        $region52: #{tpu_custom_call.1} parent=47 // pred_fallthru
          _
      $region48: #{tpu_custom_call.1} parent=5 // pred_fallthru
        _
    $region6: #{tpu_custom_call.1} parent=1 // loop_footer
      %s18 = sadd.s32 1, %s14
    $region7: #{tpu_custom_call.1} parent=1 // loop_footer_branch
      %13 = sbr.rel target = $region3
    $region8: #{tpu_custom_call.1} parent=1 // loop_exit
      _
    %1834 = vsyncpa [#allocation3], 1
    %s1835 = scalar_lea.sflag [#allocation3], 1
    %1836 = vsyncpa %s1835, 1

</llo_original>
